<compile_context>
chip_gen: v7x
topology: tpu7x:2x2x1
jax: 0.10.0
libtpu: 0.0.40
codegen_flags: <defaults>
</compile_context>

<pallas_src>
import jax
import jax.numpy as jnp
from jax.experimental import pallas as pl
from jax.experimental.pallas import tpu as pltpu

# ---- model hyperparameters (small, consistent with the module defaults) ----
N_CELLS    = 256     # number of cells in the synthetic dataset
INPUT_SIZE = 256     # adata.shape[1] (number of genes)
HIDDEN     = 128     # hidden_size
LATENT     = 16      # latent_size (module default is 10; 16 keeps lanes tidy)
NUM_LAYERS = 1       # num_layers
DROPOUT_P  = 0.5     # dropout_rate
TM         = 256     # cells per grid step: full batch (grid=1) on v5e/v6e;
                     # use 128 on v7x so two grid steps feed both TensorCores.


def _make_kernel(use_dropout: bool):
    """Build the fused forward kernel (dropout path baked in at trace time)."""

    def kernel(*refs):
        if use_dropout:
            (x_ref, eps_ref, mask_ref,
             we0, be0, we1, be1, w2, b2,
             wd0, bd0, wd1, bd1, wd2, bd2,
             recon_ref, mulv_ref) = refs
        else:
            (x_ref, eps_ref,
             we0, be0, we1, be1, w2, b2,
             wd0, bd0, wd1, bd1, wd2, bd2,
             recon_ref, mulv_ref) = refs

        hdim = we0.shape[1]          # hidden size (128) -> clean lane slices
        lat = eps_ref.shape[1]       # latent size

        if use_dropout:
            mask = mask_ref[...]     # bf16 (TM, 4H), pre-scaled {0, 1/keep}

            def drop(h, k):          # one vmul per hidden tile
                return h * mask[:, k * hdim:(k + 1) * hdim].astype(jnp.float32)
        else:
            def drop(h, k):
                return h

        x = x_ref[...]               # bf16 (TM, G)

        # ---------------- encoder ----------------
        h = jnp.dot(x, we0[...], preferred_element_type=jnp.float32) + be0[...]
        h = drop(jnp.maximum(h, 0.0), 0).astype(jnp.bfloat16)

        h = jnp.dot(h, we1[...], preferred_element_type=jnp.float32) + be1[...]
        h = drop(jnp.maximum(h, 0.0), 1).astype(jnp.bfloat16)

        # fused mu||logvar head: one (H, 2L) matmul, one lane-dense store
        ml = jnp.dot(h, w2[...], preferred_element_type=jnp.float32) + b2[...]
        mu, logvar = ml[:, :lat], ml[:, lat:]

        # ---------------- reparameterize (f32) ----------------
        z = (mu + eps_ref[...] * jnp.exp(0.5 * logvar)).astype(jnp.bfloat16)

        # ---------------- decoder ----------------
        d = jnp.dot(z, wd0[...], preferred_element_type=jnp.float32) + bd0[...]
        d = drop(jnp.maximum(d, 0.0), 2).astype(jnp.bfloat16)

        d = jnp.dot(d, wd1[...], preferred_element_type=jnp.float32) + bd1[...]
        d = drop(jnp.maximum(d, 0.0), 3).astype(jnp.bfloat16)

        r = jnp.dot(d, wd2[...], preferred_element_type=jnp.float32) + bd2[...]

        recon_ref[...] = jnp.maximum(r, 0.0).astype(recon_ref.dtype)
        mulv_ref[...] = ml           # lane-dense (TM, 2L); split in wrapper

    return kernel


def make_dropout_mask(key, n, hidden, dropout_rate):
    """Pre-scaled inverted-dropout masks for the 4 dropout sites, packed
    lane-dense: (N, 4*H) bf16 with values in {0, 1/keep}."""
    keep = 1.0 - dropout_rate
    bern = jax.random.bernoulli(key, keep, (n, 4 * hidden))
    return (bern.astype(jnp.float32) / keep).astype(jnp.bfloat16)


def scvae_forward(x, eps, params, dropout_mask=None, *, tm=TM,
                  recon_dtype=jnp.bfloat16):
    """x: (N, G) float, eps: (N, L) f32, params: 12-tuple of bf16 weights /
    f32 (1, out) biases (see __main__), dropout_mask: None (eval mode) or a
    (N, 4H) bf16 array from make_dropout_mask (training mode).
    Returns (recon_x, mu, logvar)."""
    n, g = x.shape
    l = eps.shape[1]
    hdim = params[1].shape[1]
    use_dropout = dropout_mask is not None

    # pad the cell axis to a multiple of the batch tile
    n_pad = pl.cdiv(n, tm) * tm
    if n_pad != n:
        x = jnp.pad(x, ((0, n_pad - n), (0, 0)))
        eps = jnp.pad(eps, ((0, n_pad - n), (0, 0)))
        if use_dropout:
            dropout_mask = jnp.pad(dropout_mask, ((0, n_pad - n), (0, 0)))

    x = x.astype(jnp.bfloat16)                     # halve x HBM traffic

    def row_spec(cols):                            # streamed along batch
        return pl.BlockSpec((tm, cols), lambda i: (i, 0))

    def resident_spec(arr):                        # VMEM-resident weights
        # TODO(synk): at realistic gene counts (G = 2k-20k) add
        # pipeline_mode=pl.Buffered(1) here, a gene-axis grid dimension for
        # we0/wd2/recon (or a vmem_limit_bytes bump), so tiles fit v7x's
        # 64 MiB VMEM; at G=256 everything is far under the default limit.
        return pl.BlockSpec(arr.shape, lambda i: (0, 0))

    inputs = [x, eps] + ([dropout_mask] if use_dropout else []) + list(params)
    in_specs = ([row_spec(g), row_spec(l)]
                + ([row_spec(4 * hdim)] if use_dropout else [])
                + [resident_spec(p) for p in params])
    out_specs = [row_spec(g), row_spec(2 * l)]
    out_shape = (
        jax.ShapeDtypeStruct((n_pad, g), recon_dtype),      # recon_x
        jax.ShapeDtypeStruct((n_pad, 2 * l), jnp.float32),   # mu || logvar
    )

    recon, mulv = pl.pallas_call(
        _make_kernel(use_dropout),
        out_shape=out_shape,
        grid_spec=pltpu.PrefetchScalarGridSpec(
            num_scalar_prefetch=0,
            grid=(n_pad // tm,),
            in_specs=in_specs,
            out_specs=out_specs,
        ),
        compiler_params=pltpu.CompilerParams(
            dimension_semantics=("parallel",),     # tm=128 on v7x -> 2 TCs
        ),
    )(*inputs)

    return recon[:n], mulv[:n, :l], mulv[:n, l:]


def _init_linear(key, fan_in, fan_out):
    kw, kb = jax.random.split(key)
    bound = 1.0 / jnp.sqrt(fan_in)
    w = jax.random.uniform(kw, (fan_in, fan_out), jnp.float32, -bound, bound)
    b = jax.random.uniform(kb, (1, fan_out), jnp.float32, -bound, bound)
    return w.astype(jnp.bfloat16), b               # bf16 weights, f32 biases


def _reference_forward(x, eps, params, dropout_mask=None):
    """Pure-JAX reference with the same bf16-input / f32-accumulate casts and
    the same (optional) pre-scaled dropout masks as the kernel."""
    (we0, be0, we1, be1, w2, b2, wd0, bd0, wd1, bd1, wd2, bd2) = params
    hdim = be0.shape[1]
    l = eps.shape[1]
    if dropout_mask is None:
        drop = lambda h, k: h
    else:
        m = dropout_mask.astype(jnp.float32)
        drop = lambda h, k: h * m[:, k * hdim:(k + 1) * hdim]

    xb = x.astype(jnp.bfloat16)
    h = drop(jnp.maximum(jnp.dot(xb, we0, preferred_element_type=jnp.float32) + be0, 0.0), 0)
    h = h.astype(jnp.bfloat16)
    h = drop(jnp.maximum(jnp.dot(h, we1, preferred_element_type=jnp.float32) + be1, 0.0), 1)
    h = h.astype(jnp.bfloat16)
    ml = jnp.dot(h, w2, preferred_element_type=jnp.float32) + b2
    mu, logvar = ml[:, :l], ml[:, l:]
    z = (mu + eps * jnp.exp(0.5 * logvar)).astype(jnp.bfloat16)
    d = drop(jnp.maximum(jnp.dot(z, wd0, preferred_element_type=jnp.float32) + bd0, 0.0), 2)
    d = d.astype(jnp.bfloat16)
    d = drop(jnp.maximum(jnp.dot(d, wd1, preferred_element_type=jnp.float32) + bd1, 0.0), 3)
    d = d.astype(jnp.bfloat16)
    r = jnp.maximum(jnp.dot(d, wd2, preferred_element_type=jnp.float32) + bd2, 0.0)
    return r, mu, logvar


if __name__ == "__main__":
    key = jax.random.PRNGKey(0)
    keys = jax.random.split(key, 9)

    # synthetic single-cell count-like input (non-negative)
    x = jax.random.uniform(keys[0], (N_CELLS, INPUT_SIZE), jnp.float32, 0.0, 4.0)
    eps = jax.random.normal(keys[7], (N_CELLS, LATENT), jnp.float32)

    # parameters: encoder G->H, H->H, H->2L (mu||logvar fused head);
    #             decoder L->H, H->H, H->G
    we0, be0 = _init_linear(keys[1], INPUT_SIZE, HIDDEN)
    we1, be1 = _init_linear(keys[2], HIDDEN, HIDDEN)
    we2, be2 = _init_linear(keys[3], HIDDEN, 2 * LATENT)
    wd0, bd0 = _init_linear(keys[4], LATENT, HIDDEN)
    wd1, bd1 = _init_linear(keys[5], HIDDEN, HIDDEN)
    wd2, bd2 = _init_linear(keys[6], HIDDEN, INPUT_SIZE)
    params = (we0, be0, we1, be1, we2, be2, wd0, bd0, wd1, bd1, wd2, bd2)

    # ------- eval-mode forward (no dropout), full-batch tile (grid = 1) -----
    recon, mu, logvar = scvae_forward(x, eps, params)
    jax.block_until_ready((recon, mu, logvar))
    r_ref, mu_ref, lv_ref = _reference_forward(x, eps, params)
    assert recon.shape == (N_CELLS, INPUT_SIZE) and recon.dtype == jnp.bfloat16
    assert mu.shape == (N_CELLS, LATENT) and logvar.shape == (N_CELLS, LATENT)
    assert jnp.allclose(recon.astype(jnp.float32), r_ref, rtol=2e-2, atol=2e-2)
    assert jnp.allclose(mu, mu_ref, rtol=2e-2, atol=2e-2)
    assert jnp.allclose(logvar, lv_ref, rtol=2e-2, atol=2e-2)

    # ------- training-mode forward (dropout p=0.5), verified vs reference ---
    mask = make_dropout_mask(keys[8], N_CELLS, HIDDEN, DROPOUT_P)
    recon_t, mu_t, lv_t = scvae_forward(x, eps, params, dropout_mask=mask)
    jax.block_until_ready((recon_t, mu_t, lv_t))
    rt_ref, mut_ref, lvt_ref = _reference_forward(x, eps, params, dropout_mask=mask)
    assert jnp.allclose(recon_t.astype(jnp.float32), rt_ref, rtol=2e-2, atol=2e-2)
    assert jnp.allclose(mu_t, mut_ref, rtol=2e-2, atol=2e-2)
    assert jnp.allclose(lv_t, lvt_ref, rtol=2e-2, atol=2e-2)
    assert bool(jnp.all(recon_t.astype(jnp.float32) >= 0.0))    # final ReLU

    # ------- v7x-style 2-step "parallel" grid (tm=128) also runs clean ------
    recon_p, mu_p, lv_p = scvae_forward(x, eps, params, dropout_mask=mask, tm=128)
    jax.block_until_ready((recon_p, mu_p, lv_p))
    assert jnp.allclose(recon_p.astype(jnp.float32), rt_ref, rtol=2e-2, atol=2e-2)
    assert jnp.allclose(mu_p, mut_ref, rtol=2e-2, atol=2e-2)

    print("KERNEL_OK")
</pallas_src>

<mosaic_0001>
module attributes {stable_mosaic.version = 11 : i64} {
  func.func @kernel(%arg0: i32, %arg1: memref<256x256xbf16, #tpu.memory_space<vmem>>, %arg2: memref<256x16xf32, #tpu.memory_space<vmem>>, %arg3: memref<256x128xbf16, #tpu.memory_space<vmem>>, %arg4: memref<1x128xf32, #tpu.memory_space<vmem>>, %arg5: memref<128x128xbf16, #tpu.memory_space<vmem>>, %arg6: memref<1x128xf32, #tpu.memory_space<vmem>>, %arg7: memref<128x32xbf16, #tpu.memory_space<vmem>>, %arg8: memref<1x32xf32, #tpu.memory_space<vmem>>, %arg9: memref<16x128xbf16, #tpu.memory_space<vmem>>, %arg10: memref<1x128xf32, #tpu.memory_space<vmem>>, %arg11: memref<128x128xbf16, #tpu.memory_space<vmem>>, %arg12: memref<1x128xf32, #tpu.memory_space<vmem>>, %arg13: memref<128x256xbf16, #tpu.memory_space<vmem>>, %arg14: memref<1x256xf32, #tpu.memory_space<vmem>>, %arg15: memref<256x256xbf16, #tpu.memory_space<vmem>>, %arg16: memref<256x32xf32, #tpu.memory_space<vmem>>) attributes {dimension_semantics = [#tpu.dimension_semantics<parallel>], iteration_bounds = array<i64: 1>, scalar_prefetch = 0 : i64, scratch_operands = 0 : i64, tpu.core_type = #tpu.core_type<tc>, window_params = [{transform_indices = @transform_0, window_bounds = array<i64: 256, 256>}, {transform_indices = @transform_1, window_bounds = array<i64: 256, 16>}, {pipeline_mode = #tpu.pipeline_mode<synchronous>, transform_indices = @transform_2, window_bounds = array<i64: 256, 128>}, {pipeline_mode = #tpu.pipeline_mode<synchronous>, transform_indices = @transform_3, window_bounds = array<i64: 1, 128>}, {pipeline_mode = #tpu.pipeline_mode<synchronous>, transform_indices = @transform_4, window_bounds = array<i64: 128, 128>}, {pipeline_mode = #tpu.pipeline_mode<synchronous>, transform_indices = @transform_5, window_bounds = array<i64: 1, 128>}, {pipeline_mode = #tpu.pipeline_mode<synchronous>, transform_indices = @transform_6, window_bounds = array<i64: 128, 32>}, {pipeline_mode = #tpu.pipeline_mode<synchronous>, transform_indices = @transform_7, window_bounds = array<i64: 1, 32>}, {pipeline_mode = #tpu.pipeline_mode<synchronous>, transform_indices = @transform_8, window_bounds = array<i64: 16, 128>}, {pipeline_mode = #tpu.pipeline_mode<synchronous>, transform_indices = @transform_9, window_bounds = array<i64: 1, 128>}, {pipeline_mode = #tpu.pipeline_mode<synchronous>, transform_indices = @transform_10, window_bounds = array<i64: 128, 128>}, {pipeline_mode = #tpu.pipeline_mode<synchronous>, transform_indices = @transform_11, window_bounds = array<i64: 1, 128>}, {pipeline_mode = #tpu.pipeline_mode<synchronous>, transform_indices = @transform_12, window_bounds = array<i64: 128, 256>}, {pipeline_mode = #tpu.pipeline_mode<synchronous>, transform_indices = @transform_13, window_bounds = array<i64: 1, 256>}, {transform_indices = @transform_14, window_bounds = array<i64: 256, 256>}, {transform_indices = @transform_15, window_bounds = array<i64: 256, 32>}]} {
    %c0 = arith.constant 0 : index
    %c0_0 = arith.constant 0 : index
    %0 = vector.load %arg1[%c0, %c0_0] : memref<256x256xbf16, #tpu.memory_space<vmem>>, vector<256x256xbf16>
    %c0_1 = arith.constant 0 : index
    %c0_2 = arith.constant 0 : index
    %1 = vector.load %arg3[%c0_1, %c0_2] : memref<256x128xbf16, #tpu.memory_space<vmem>>, vector<256x128xbf16>
    %cst = arith.constant dense<0.000000e+00> : vector<256x128xf32>
    %2 = tpu.matmul %0, %1, %cst {dimension_numbers = #tpu.dot_dimension_numbers<[1], [0], [0], [1], [0, 0, 1, 1], [], []>} : vector<256x256xbf16>, vector<256x128xbf16>, vector<256x128xf32> -> vector<256x128xf32>
    %c0_3 = arith.constant 0 : index
    %c0_4 = arith.constant 0 : index
    %3 = vector.load %arg4[%c0_3, %c0_4] : memref<1x128xf32, #tpu.memory_space<vmem>>, vector<1x128xf32>
    %4 = vector.broadcast %3 : vector<1x128xf32> to vector<256x128xf32>
    %5 = arith.addf %2, %4 : vector<256x128xf32>
    %cst_5 = arith.constant 0.000000e+00 : f32
    %6 = vector.broadcast %cst_5 : f32 to vector<256x128xf32>
    %7 = arith.maximumf %5, %6 : vector<256x128xf32>
    %8 = arith.truncf %7 : vector<256x128xf32> to vector<256x128xbf16>
    %c0_6 = arith.constant 0 : index
    %c0_7 = arith.constant 0 : index
    %9 = vector.load %arg5[%c0_6, %c0_7] : memref<128x128xbf16, #tpu.memory_space<vmem>>, vector<128x128xbf16>
    %cst_8 = arith.constant dense<0.000000e+00> : vector<256x128xf32>
    %10 = tpu.matmul %8, %9, %cst_8 {dimension_numbers = #tpu.dot_dimension_numbers<[1], [0], [0], [1], [0, 0, 1, 1], [], []>} : vector<256x128xbf16>, vector<128x128xbf16>, vector<256x128xf32> -> vector<256x128xf32>
    %c0_9 = arith.constant 0 : index
    %c0_10 = arith.constant 0 : index
    %11 = vector.load %arg6[%c0_9, %c0_10] : memref<1x128xf32, #tpu.memory_space<vmem>>, vector<1x128xf32>
    %12 = vector.broadcast %11 : vector<1x128xf32> to vector<256x128xf32>
    %13 = arith.addf %10, %12 : vector<256x128xf32>
    %cst_11 = arith.constant 0.000000e+00 : f32
    %14 = vector.broadcast %cst_11 : f32 to vector<256x128xf32>
    %15 = arith.maximumf %13, %14 : vector<256x128xf32>
    %16 = arith.truncf %15 : vector<256x128xf32> to vector<256x128xbf16>
    %c0_12 = arith.constant 0 : index
    %c0_13 = arith.constant 0 : index
    %17 = vector.load %arg7[%c0_12, %c0_13] : memref<128x32xbf16, #tpu.memory_space<vmem>>, vector<128x32xbf16>
    %cst_14 = arith.constant dense<0.000000e+00> : vector<256x32xf32>
    %18 = tpu.matmul %16, %17, %cst_14 {dimension_numbers = #tpu.dot_dimension_numbers<[1], [0], [0], [1], [0, 0, 1, 1], [], []>} : vector<256x128xbf16>, vector<128x32xbf16>, vector<256x32xf32> -> vector<256x32xf32>
    %c0_15 = arith.constant 0 : index
    %c0_16 = arith.constant 0 : index
    %19 = vector.load %arg8[%c0_15, %c0_16] : memref<1x32xf32, #tpu.memory_space<vmem>>, vector<1x32xf32>
    %20 = vector.broadcast %19 : vector<1x32xf32> to vector<256x32xf32>
    %21 = arith.addf %18, %20 : vector<256x32xf32>
    %22 = vector.extract_strided_slice %21 {offsets = [0, 0], sizes = [256, 16], strides = [1, 1]} : vector<256x32xf32> to vector<256x16xf32>
    %23 = vector.extract_strided_slice %21 {offsets = [0, 16], sizes = [256, 16], strides = [1, 1]} : vector<256x32xf32> to vector<256x16xf32>
    %c0_17 = arith.constant 0 : index
    %c0_18 = arith.constant 0 : index
    %24 = vector.load %arg2[%c0_17, %c0_18] : memref<256x16xf32, #tpu.memory_space<vmem>>, vector<256x16xf32>
    %cst_19 = arith.constant 5.000000e-01 : f32
    %25 = vector.broadcast %cst_19 : f32 to vector<256x16xf32>
    %26 = arith.mulf %25, %23 : vector<256x16xf32>
    %27 = math.exp %26 : vector<256x16xf32>
    %28 = arith.mulf %24, %27 : vector<256x16xf32>
    %29 = arith.addf %22, %28 : vector<256x16xf32>
    %30 = arith.truncf %29 : vector<256x16xf32> to vector<256x16xbf16>
    %c0_20 = arith.constant 0 : index
    %c0_21 = arith.constant 0 : index
    %31 = vector.load %arg9[%c0_20, %c0_21] : memref<16x128xbf16, #tpu.memory_space<vmem>>, vector<16x128xbf16>
    %cst_22 = arith.constant dense<0.000000e+00> : vector<256x128xf32>
    %32 = tpu.matmul %30, %31, %cst_22 {dimension_numbers = #tpu.dot_dimension_numbers<[1], [0], [0], [1], [0, 0, 1, 1], [], []>} : vector<256x16xbf16>, vector<16x128xbf16>, vector<256x128xf32> -> vector<256x128xf32>
    %c0_23 = arith.constant 0 : index
    %c0_24 = arith.constant 0 : index
    %33 = vector.load %arg10[%c0_23, %c0_24] : memref<1x128xf32, #tpu.memory_space<vmem>>, vector<1x128xf32>
    %34 = vector.broadcast %33 : vector<1x128xf32> to vector<256x128xf32>
    %35 = arith.addf %32, %34 : vector<256x128xf32>
    %cst_25 = arith.constant 0.000000e+00 : f32
    %36 = vector.broadcast %cst_25 : f32 to vector<256x128xf32>
    %37 = arith.maximumf %35, %36 : vector<256x128xf32>
    %38 = arith.truncf %37 : vector<256x128xf32> to vector<256x128xbf16>
    %c0_26 = arith.constant 0 : index
    %c0_27 = arith.constant 0 : index
    %39 = vector.load %arg11[%c0_26, %c0_27] : memref<128x128xbf16, #tpu.memory_space<vmem>>, vector<128x128xbf16>
    %cst_28 = arith.constant dense<0.000000e+00> : vector<256x128xf32>
    %40 = tpu.matmul %38, %39, %cst_28 {dimension_numbers = #tpu.dot_dimension_numbers<[1], [0], [0], [1], [0, 0, 1, 1], [], []>} : vector<256x128xbf16>, vector<128x128xbf16>, vector<256x128xf32> -> vector<256x128xf32>
    %c0_29 = arith.constant 0 : index
    %c0_30 = arith.constant 0 : index
    %41 = vector.load %arg12[%c0_29, %c0_30] : memref<1x128xf32, #tpu.memory_space<vmem>>, vector<1x128xf32>
    %42 = vector.broadcast %41 : vector<1x128xf32> to vector<256x128xf32>
    %43 = arith.addf %40, %42 : vector<256x128xf32>
    %cst_31 = arith.constant 0.000000e+00 : f32
    %44 = vector.broadcast %cst_31 : f32 to vector<256x128xf32>
    %45 = arith.maximumf %43, %44 : vector<256x128xf32>
    %46 = arith.truncf %45 : vector<256x128xf32> to vector<256x128xbf16>
    %c0_32 = arith.constant 0 : index
    %c0_33 = arith.constant 0 : index
    %47 = vector.load %arg13[%c0_32, %c0_33] : memref<128x256xbf16, #tpu.memory_space<vmem>>, vector<128x256xbf16>
    %cst_34 = arith.constant dense<0.000000e+00> : vector<256x256xf32>
    %48 = tpu.matmul %46, %47, %cst_34 {dimension_numbers = #tpu.dot_dimension_numbers<[1], [0], [0], [1], [0, 0, 1, 1], [], []>} : vector<256x128xbf16>, vector<128x256xbf16>, vector<256x256xf32> -> vector<256x256xf32>
    %c0_35 = arith.constant 0 : index
    %c0_36 = arith.constant 0 : index
    %49 = vector.load %arg14[%c0_35, %c0_36] : memref<1x256xf32, #tpu.memory_space<vmem>>, vector<1x256xf32>
    %50 = vector.broadcast %49 : vector<1x256xf32> to vector<256x256xf32>
    %51 = arith.addf %48, %50 : vector<256x256xf32>
    %cst_37 = arith.constant 0.000000e+00 : f32
    %52 = vector.broadcast %cst_37 : f32 to vector<256x256xf32>
    %53 = arith.maximumf %51, %52 : vector<256x256xf32>
    %54 = arith.truncf %53 : vector<256x256xf32> to vector<256x256xbf16>
    %c0_38 = arith.constant 0 : index
    %c0_39 = arith.constant 0 : index
    %55 = vector.load %arg15[%c0_38, %c0_39] : memref<256x256xbf16, #tpu.memory_space<vmem>>, vector<256x256xbf16>
    tpu.vector_store %arg15[%c0_38, %c0_39], %54 {strides = array<i32>} : memref<256x256xbf16, #tpu.memory_space<vmem>>, vector<256x256xbf16>,
    %c0_40 = arith.constant 0 : index
    %c0_41 = arith.constant 0 : index
    %56 = vector.load %arg16[%c0_40, %c0_41] : memref<256x32xf32, #tpu.memory_space<vmem>>, vector<256x32xf32>
    tpu.vector_store %arg16[%c0_40, %c0_41], %21 {strides = array<i32>} : memref<256x32xf32, #tpu.memory_space<vmem>>, vector<256x32xf32>,
    return
  }
  func.func @transform_0(%arg0: i32) -> (i32, i32) {
    %c0_i32 = arith.constant 0 : i32
    %c0_i32_0 = arith.constant 0 : i32
    return %arg0, %c0_i32 : i32, i32
  }
  func.func @transform_1(%arg0: i32) -> (i32, i32) {
    %c0_i32 = arith.constant 0 : i32
    %c0_i32_0 = arith.constant 0 : i32
    return %arg0, %c0_i32 : i32, i32
  }
  func.func @transform_2(%arg0: i32) -> (i32, i32) {
    %c0_i32 = arith.constant 0 : i32
    %c0_i32_0 = arith.constant 0 : i32
    %c0_i32_1 = arith.constant 0 : i32
    return %c0_i32, %c0_i32_0 : i32, i32
  }
  func.func @transform_3(%arg0: i32) -> (i32, i32) {
    %c0_i32 = arith.constant 0 : i32
    %c0_i32_0 = arith.constant 0 : i32
    %c0_i32_1 = arith.constant 0 : i32
    return %c0_i32, %c0_i32_0 : i32, i32
  }
  func.func @transform_4(%arg0: i32) -> (i32, i32) {
    %c0_i32 = arith.constant 0 : i32
    %c0_i32_0 = arith.constant 0 : i32
    %c0_i32_1 = arith.constant 0 : i32
    return %c0_i32, %c0_i32_0 : i32, i32
  }
  func.func @transform_5(%arg0: i32) -> (i32, i32) {
    %c0_i32 = arith.constant 0 : i32
    %c0_i32_0 = arith.constant 0 : i32
    %c0_i32_1 = arith.constant 0 : i32
    return %c0_i32, %c0_i32_0 : i32, i32
  }
  func.func @transform_6(%arg0: i32) -> (i32, i32) {
    %c0_i32 = arith.constant 0 : i32
    %c0_i32_0 = arith.constant 0 : i32
    %c0_i32_1 = arith.constant 0 : i32
    return %c0_i32, %c0_i32_0 : i32, i32
  }
  func.func @transform_7(%arg0: i32) -> (i32, i32) {
    %c0_i32 = arith.constant 0 : i32
    %c0_i32_0 = arith.constant 0 : i32
    %c0_i32_1 = arith.constant 0 : i32
    return %c0_i32, %c0_i32_0 : i32, i32
  }
  func.func @transform_8(%arg0: i32) -> (i32, i32) {
    %c0_i32 = arith.constant 0 : i32
    %c0_i32_0 = arith.constant 0 : i32
    %c0_i32_1 = arith.constant 0 : i32
    return %c0_i32, %c0_i32_0 : i32, i32
  }
  func.func @transform_9(%arg0: i32) -> (i32, i32) {
    %c0_i32 = arith.constant 0 : i32
    %c0_i32_0 = arith.constant 0 : i32
    %c0_i32_1 = arith.constant 0 : i32
    return %c0_i32, %c0_i32_0 : i32, i32
  }
  func.func @transform_10(%arg0: i32) -> (i32, i32) {
    %c0_i32 = arith.constant 0 : i32
    %c0_i32_0 = arith.constant 0 : i32
    %c0_i32_1 = arith.constant 0 : i32
    return %c0_i32, %c0_i32_0 : i32, i32
  }
  func.func @transform_11(%arg0: i32) -> (i32, i32) {
    %c0_i32 = arith.constant 0 : i32
    %c0_i32_0 = arith.constant 0 : i32
    %c0_i32_1 = arith.constant 0 : i32
    return %c0_i32, %c0_i32_0 : i32, i32
  }
  func.func @transform_12(%arg0: i32) -> (i32, i32) {
    %c0_i32 = arith.constant 0 : i32
    %c0_i32_0 = arith.constant 0 : i32
    %c0_i32_1 = arith.constant 0 : i32
    return %c0_i32, %c0_i32_0 : i32, i32
  }
  func.func @transform_13(%arg0: i32) -> (i32, i32) {
    %c0_i32 = arith.constant 0 : i32
    %c0_i32_0 = arith.constant 0 : i32
    %c0_i32_1 = arith.constant 0 : i32
    return %c0_i32, %c0_i32_0 : i32, i32
  }
  func.func @transform_14(%arg0: i32) -> (i32, i32) {
    %c0_i32 = arith.constant 0 : i32
    %c0_i32_0 = arith.constant 0 : i32
    return %arg0, %c0_i32 : i32, i32
  }
  func.func @transform_15(%arg0: i32) -> (i32, i32) {
    %c0_i32 = arith.constant 0 : i32
    %c0_i32_0 = arith.constant 0 : i32
    return %arg0, %c0_i32 : i32, i32
  }
}

</mosaic_0001>

<llo_original>
// kernel: tpu_custom_call.1
$region0: #{tpu_custom_call.1}
  #allocation0 [shape = 'u32[]', space=smem, size = 0x4, offset = 0x4, fixed_abs, tag = 'smem constant byte address 0x4 - core index']
  #allocation1 [shape = 'u32[144,128]{1,0:T(1,128)}', space=vmem, size = 0x12000, scoped, tag = 'internal scratch']
  %s0 = inlined_call_operand.vmem [shape: bf16[256,256], index: 0, kind: input, shape index: {}]
  %s1 = inlined_call_operand.vmem [shape: f32[256,16], index: 1, kind: input, shape index: {}]
  %s2 = inlined_call_operand.hbm [shape: bf16[256,128], index: 2, kind: input, shape index: {}]
  %s3 = inlined_call_operand.vmem [shape: f32[1,128], index: 3, kind: input, shape index: {}]
  %s4 = inlined_call_operand.hbm [shape: bf16[128,128], index: 4, kind: input, shape index: {}]
  %s5 = inlined_call_operand.vmem [shape: f32[1,128], index: 5, kind: input, shape index: {}]
  %s6 = inlined_call_operand.vmem [shape: bf16[128,32], index: 6, kind: input, shape index: {}]
  %s7 = inlined_call_operand.vmem [shape: f32[1,32], index: 7, kind: input, shape index: {}]
  %s8 = inlined_call_operand.vmem [shape: bf16[16,128], index: 8, kind: input, shape index: {}]
  %s9 = inlined_call_operand.vmem [shape: f32[1,128], index: 9, kind: input, shape index: {}]
  %s10 = inlined_call_operand.hbm [shape: bf16[128,128], index: 10, kind: input, shape index: {}]
  %s11 = inlined_call_operand.vmem [shape: f32[1,128], index: 11, kind: input, shape index: {}]
  %s12 = inlined_call_operand.vmem [shape: bf16[128,256], index: 12, kind: input, shape index: {}]
  %s13 = inlined_call_operand.vmem [shape: f32[1,256], index: 13, kind: input, shape index: {}]
  %s14 = inlined_call_operand.hbm [shape: bf16[256,256], index: 14, kind: output, shape index: {0}]
  %s15 = inlined_call_operand.vmem [shape: f32[256,32], index: 15, kind: output, shape index: {1}]
  %16 = xla_tuple %s14, %s15
  %s17 = sld [smem:[#allocation0]]
  $region86: #{tpu_custom_call.1} parent=0
    _
  %s19 = ssub.s32 1, %s17
  %s20 = scalar_select 0, %s19, %s17
  $region1: #{tpu_custom_call.1} parent=0
    #allocation2 [shape = 'u8[65536]{0}', space=vmem, size = 0x10000, scoped, tag = 'input window, operand 2, single buffered']
    #allocation3 [shape = 's32[1]{0}', space=sflag, size = 0x4, scoped, tag = 'scoped memory for tpu_custom_call.1']
    #allocation4 [shape = 's32[1]{0}', space=sflag, size = 0x4, scoped, tag = 'scoped memory for tpu_custom_call.1']
    #allocation5 [shape = 'u8[32768]{0}', space=vmem, size = 0x8000, scoped, tag = 'input window, operand 4, single buffered']
    #allocation6 [shape = 's32[1]{0}', space=sflag, size = 0x4, scoped, tag = 'scoped memory for tpu_custom_call.1']
    #allocation7 [shape = 'u8[32768]{0}', space=vmem, size = 0x8000, scoped, tag = 'input window, operand 10, single buffered']
    #allocation8 [shape = 'u8[131072]{0}', space=vmem, size = 0x20000, scoped, tag = 'output window, operand 0, single buffered']
    %21 = vsyncpa [#allocation3], 0
    %22 = vsyncpa [#allocation6], 0
    %23 = vsyncpa [#allocation4], 0
    // Predicated region
    $region2: #{tpu_custom_call.1} parent=1 // pred_check
      _
    $region3: #{tpu_custom_call.1} parent=1 // pred_check_branch
      %25 = sbr.rel (0) target = $region5
    $region4: #{tpu_custom_call.1} parent=1 // pred_region
      _
    $region5: #{tpu_custom_call.1} parent=1 // pred_fallthru
      _
    // Predicated region
    $region6: #{tpu_custom_call.1} parent=1 // pred_check
      _
    $region7: #{tpu_custom_call.1} parent=1 // pred_check_branch
      %27 = sbr.rel (0) target = $region9
    $region8: #{tpu_custom_call.1} parent=1 // pred_region
      _
    $region9: #{tpu_custom_call.1} parent=1 // pred_fallthru
      _
    // Predicated region
    $region10: #{tpu_custom_call.1} parent=1 // pred_check
      _
    $region11: #{tpu_custom_call.1} parent=1 // pred_check_branch
      %29 = sbr.rel (0) target = $region13
    $region12: #{tpu_custom_call.1} parent=1 // pred_region
      %s31 = ssub.s32 2048, 2048
      %32 = vsyncadd [#allocation3], %s31
      %s33 = sshll.u32 [#allocation2], 4
      %s34 = int_to_ptr.vmem [resolvable:$true] %s33
      %39 = dma.hbm_to_vmem [thread:$0]  %s2, 2048, %s34, [#allocation3], 64, 64, 4
    $region13: #{tpu_custom_call.1} parent=1 // pred_fallthru
      _
    // Predicated region
    $region14: #{tpu_custom_call.1} parent=1 // pred_check
      _
    $region15: #{tpu_custom_call.1} parent=1 // pred_check_branch
      %41 = sbr.rel (0) target = $region17
    $region16: #{tpu_custom_call.1} parent=1 // pred_region
      _
    $region17: #{tpu_custom_call.1} parent=1 // pred_fallthru
      _
    // Predicated region
    $region18: #{tpu_custom_call.1} parent=1 // pred_check
      _
    $region19: #{tpu_custom_call.1} parent=1 // pred_check_branch
      %43 = sbr.rel (0) target = $region21
    $region20: #{tpu_custom_call.1} parent=1 // pred_region
      %s45 = ssub.s32 1024, 1024
      %46 = vsyncadd [#allocation6], %s45
      %s47 = sshll.u32 [#allocation5], 4
      %s48 = int_to_ptr.vmem [resolvable:$true] %s47
      %53 = dma.hbm_to_vmem [thread:$0]  %s4, 1024, %s48, [#allocation6], 64, 64, 4
    $region21: #{tpu_custom_call.1} parent=1 // pred_fallthru
      _
    // Predicated region
    $region22: #{tpu_custom_call.1} parent=1 // pred_check
      _
    $region23: #{tpu_custom_call.1} parent=1 // pred_check_branch
      %55 = sbr.rel (0) target = $region25
    $region24: #{tpu_custom_call.1} parent=1 // pred_region
      _
    $region25: #{tpu_custom_call.1} parent=1 // pred_fallthru
      _
    // Predicated region
    $region26: #{tpu_custom_call.1} parent=1 // pred_check
      _
    $region27: #{tpu_custom_call.1} parent=1 // pred_check_branch
      %57 = sbr.rel (0) target = $region29
    $region28: #{tpu_custom_call.1} parent=1 // pred_region
      _
    $region29: #{tpu_custom_call.1} parent=1 // pred_fallthru
      _
    // Predicated region
    $region30: #{tpu_custom_call.1} parent=1 // pred_check
      _
    $region31: #{tpu_custom_call.1} parent=1 // pred_check_branch
      %59 = sbr.rel (0) target = $region33
    $region32: #{tpu_custom_call.1} parent=1 // pred_region
      _
    $region33: #{tpu_custom_call.1} parent=1 // pred_fallthru
      _
    // Predicated region
    $region34: #{tpu_custom_call.1} parent=1 // pred_check
      _
    $region35: #{tpu_custom_call.1} parent=1 // pred_check_branch
      %61 = sbr.rel (0) target = $region37
    $region36: #{tpu_custom_call.1} parent=1 // pred_region
      _
    $region37: #{tpu_custom_call.1} parent=1 // pred_fallthru
      _
    // Predicated region
    $region38: #{tpu_custom_call.1} parent=1 // pred_check
      _
    $region39: #{tpu_custom_call.1} parent=1 // pred_check_branch
      %63 = sbr.rel (0) target = $region41
    $region40: #{tpu_custom_call.1} parent=1 // pred_region
      _
    $region41: #{tpu_custom_call.1} parent=1 // pred_fallthru
      _
    // Predicated region
    $region42: #{tpu_custom_call.1} parent=1 // pred_check
      _
    $region43: #{tpu_custom_call.1} parent=1 // pred_check_branch
      %65 = sbr.rel (0) target = $region45
    $region44: #{tpu_custom_call.1} parent=1 // pred_region
      %s67 = ssub.s32 1024, 1024
      %68 = vsyncadd [#allocation6], %s67
      %s69 = sshll.u32 [#allocation7], 4
      %s70 = int_to_ptr.vmem [resolvable:$true] %s69
      %75 = dma.hbm_to_vmem [thread:$0]  %s10, 1024, %s70, [#allocation6], 64, 64, 4
    $region45: #{tpu_custom_call.1} parent=1 // pred_fallthru
      _
    // Predicated region
    $region46: #{tpu_custom_call.1} parent=1 // pred_check
      _
    $region47: #{tpu_custom_call.1} parent=1 // pred_check_branch
      %77 = sbr.rel (0) target = $region49
    $region48: #{tpu_custom_call.1} parent=1 // pred_region
      _
    $region49: #{tpu_custom_call.1} parent=1 // pred_fallthru
      _
    // Predicated region
    $region50: #{tpu_custom_call.1} parent=1 // pred_check
      _
    $region51: #{tpu_custom_call.1} parent=1 // pred_check_branch
      %79 = sbr.rel (0) target = $region53
    $region52: #{tpu_custom_call.1} parent=1 // pred_region
      _
    $region53: #{tpu_custom_call.1} parent=1 // pred_fallthru
      _
    // Predicated region
    $region54: #{tpu_custom_call.1} parent=1 // pred_check
      _
    $region55: #{tpu_custom_call.1} parent=1 // pred_check_branch
      %81 = sbr.rel (0) target = $region57
    $region56: #{tpu_custom_call.1} parent=1 // pred_region
      _
    $region57: #{tpu_custom_call.1} parent=1 // pred_fallthru
      _
    // Predicated region
    $region58: #{tpu_custom_call.1} parent=1 // pred_check
      _
    $region59: #{tpu_custom_call.1} parent=1 // pred_check_branch
      %83 = sbr.rel (0) target = $region61
    $region60: #{tpu_custom_call.1} parent=1 // pred_region
      %84 = dma.done [#allocation3], 2048
    $region61: #{tpu_custom_call.1} parent=1 // pred_fallthru
      _
    // Predicated region
    $region62: #{tpu_custom_call.1} parent=1 // pred_check
      _
    $region63: #{tpu_custom_call.1} parent=1 // pred_check_branch
      %86 = sbr.rel (0) target = $region65
    $region64: #{tpu_custom_call.1} parent=1 // pred_region
      %87 = dma.done [#allocation6], 1024
    $region65: #{tpu_custom_call.1} parent=1 // pred_fallthru
      _
    // Predicated region
    $region66: #{tpu_custom_call.1} parent=1 // pred_check
      _
    $region67: #{tpu_custom_call.1} parent=1 // pred_check_branch
      %89 = sbr.rel (0) target = $region69
    $region68: #{tpu_custom_call.1} parent=1 // pred_region
      %90 = dma.done [#allocation6], 1024
    $region69: #{tpu_custom_call.1} parent=1 // pred_fallthru
      _
    %v92 = vld [vmem:[%s0] sm:$0xff]
    %v93 = vld [vmem:[%s0 + $0x8] sm:$0xff]
    %v94 = vld [vmem:[%s0 + $0x10] sm:$0xff]
    %v95 = vld [vmem:[%s0 + $0x18] sm:$0xff]
    %v96 = vld [vmem:[%s0 + $0x20] sm:$0xff]
    %v97 = vld [vmem:[%s0 + $0x28] sm:$0xff]
    %v98 = vld [vmem:[%s0 + $0x30] sm:$0xff]
    %v99 = vld [vmem:[%s0 + $0x38] sm:$0xff]
    %v100 = vld [vmem:[%s0 + $0x40] sm:$0xff]
    %v101 = vld [vmem:[%s0 + $0x48] sm:$0xff]
    %v102 = vld [vmem:[%s0 + $0x50] sm:$0xff]
    %v103 = vld [vmem:[%s0 + $0x58] sm:$0xff]
    %v104 = vld [vmem:[%s0 + $0x60] sm:$0xff]
    %v105 = vld [vmem:[%s0 + $0x68] sm:$0xff]
    %v106 = vld [vmem:[%s0 + $0x70] sm:$0xff]
    %v107 = vld [vmem:[%s0 + $0x78] sm:$0xff]
    %v108 = vld [vmem:[%s0 + $0x80] sm:$0xff]
    %v109 = vld [vmem:[%s0 + $0x88] sm:$0xff]
    %v110 = vld [vmem:[%s0 + $0x90] sm:$0xff]
    %v111 = vld [vmem:[%s0 + $0x98] sm:$0xff]
    %v112 = vld [vmem:[%s0 + $0xa0] sm:$0xff]
    %v113 = vld [vmem:[%s0 + $0xa8] sm:$0xff]
    %v114 = vld [vmem:[%s0 + $0xb0] sm:$0xff]
    %v115 = vld [vmem:[%s0 + $0xb8] sm:$0xff]
    %v116 = vld [vmem:[%s0 + $0xc0] sm:$0xff]
    %v117 = vld [vmem:[%s0 + $0xc8] sm:$0xff]
    %v118 = vld [vmem:[%s0 + $0xd0] sm:$0xff]
    %v119 = vld [vmem:[%s0 + $0xd8] sm:$0xff]
    %v120 = vld [vmem:[%s0 + $0xe0] sm:$0xff]
    %v121 = vld [vmem:[%s0 + $0xe8] sm:$0xff]
    %v122 = vld [vmem:[%s0 + $0xf0] sm:$0xff]
    %v123 = vld [vmem:[%s0 + $0xf8] sm:$0xff]
    %v124 = vld [vmem:[#allocation2] sm:$0xf]
    %v125 = vld [vmem:[#allocation2 + $0x4] sm:$0xf]
    %v126 = vld [vmem:[#allocation2 + $0x8] sm:$0xf]
    %v127 = vld [vmem:[#allocation2 + $0xc] sm:$0xf]
    %v128 = vld [vmem:[#allocation2 + $0x10] sm:$0xf]
    %v129 = vld [vmem:[#allocation2 + $0x14] sm:$0xf]
    %v130 = vld [vmem:[#allocation2 + $0x18] sm:$0xf]
    %v131 = vld [vmem:[#allocation2 + $0x1c] sm:$0xf]
    %v132 = vld [vmem:[#allocation2 + $0x20] sm:$0xf]
    %v133 = vld [vmem:[#allocation2 + $0x24] sm:$0xf]
    %v134 = vld [vmem:[#allocation2 + $0x28] sm:$0xf]
    %v135 = vld [vmem:[#allocation2 + $0x2c] sm:$0xf]
    %v136 = vld [vmem:[#allocation2 + $0x30] sm:$0xf]
    %v137 = vld [vmem:[#allocation2 + $0x34] sm:$0xf]
    %v138 = vld [vmem:[#allocation2 + $0x38] sm:$0xf]
    %v139 = vld [vmem:[#allocation2 + $0x3c] sm:$0xf]
    %v140 = vld [vmem:[#allocation2 + $0x40] sm:$0xf]
    %v141 = vld [vmem:[#allocation2 + $0x44] sm:$0xf]
    %v142 = vld [vmem:[#allocation2 + $0x48] sm:$0xf]
    %v143 = vld [vmem:[#allocation2 + $0x4c] sm:$0xf]
    %v144 = vld [vmem:[#allocation2 + $0x50] sm:$0xf]
    %v145 = vld [vmem:[#allocation2 + $0x54] sm:$0xf]
    %v146 = vld [vmem:[#allocation2 + $0x58] sm:$0xf]
    %v147 = vld [vmem:[#allocation2 + $0x5c] sm:$0xf]
    %v148 = vld [vmem:[#allocation2 + $0x60] sm:$0xf]
    %v149 = vld [vmem:[#allocation2 + $0x64] sm:$0xf]
    %v150 = vld [vmem:[#allocation2 + $0x68] sm:$0xf]
    %v151 = vld [vmem:[#allocation2 + $0x6c] sm:$0xf]
    %v152 = vld [vmem:[#allocation2 + $0x70] sm:$0xf]
    %v153 = vld [vmem:[#allocation2 + $0x74] sm:$0xf]
    %v154 = vld [vmem:[#allocation2 + $0x78] sm:$0xf]
    %v155 = vld [vmem:[#allocation2 + $0x7c] sm:$0xf]
    %v156 = vld [vmem:[%s3] sm:$0x1]
    %v158 = vlaneseq
    %v159 = vshrl.u32 %v158, 7
    %v160 = vsub.s32 0, %v159
    %v161 = vrot.slane %v156, %v160
    %v195 = vunpack.c.l.b16 %v92
    %v196 = vunpack.c.h.b16 %v92
    %v197 = vunpack.c.l.b16 %v93
    %v198 = vunpack.c.h.b16 %v93
    %v199 = vunpack.c.l.b16 %v94
    %v200 = vunpack.c.h.b16 %v94
    %v201 = vunpack.c.l.b16 %v95
    %v202 = vunpack.c.h.b16 %v95
    %v203 = vunpack.c.l.b16 %v96
    %v204 = vunpack.c.h.b16 %v96
    %v205 = vunpack.c.l.b16 %v97
    %v206 = vunpack.c.h.b16 %v97
    %v207 = vunpack.c.l.b16 %v98
    %v208 = vunpack.c.h.b16 %v98
    %v209 = vunpack.c.l.b16 %v99
    %v210 = vunpack.c.h.b16 %v99
    %v211 = vunpack.c.l.b16 %v100
    %v212 = vunpack.c.h.b16 %v100
    %v213 = vunpack.c.l.b16 %v101
    %v214 = vunpack.c.h.b16 %v101
    %v215 = vunpack.c.l.b16 %v102
    %v216 = vunpack.c.h.b16 %v102
    %v217 = vunpack.c.l.b16 %v103
    %v218 = vunpack.c.h.b16 %v103
    %v219 = vunpack.c.l.b16 %v104
    %v220 = vunpack.c.h.b16 %v104
    %v221 = vunpack.c.l.b16 %v105
    %v222 = vunpack.c.h.b16 %v105
    %v223 = vunpack.c.l.b16 %v106
    %v224 = vunpack.c.h.b16 %v106
    %v225 = vunpack.c.l.b16 %v107
    %v226 = vunpack.c.h.b16 %v107
    %v227 = vunpack.c.l.b16 %v108
    %v228 = vunpack.c.h.b16 %v108
    %v229 = vunpack.c.l.b16 %v109
    %v230 = vunpack.c.h.b16 %v109
    %v231 = vunpack.c.l.b16 %v110
    %v232 = vunpack.c.h.b16 %v110
    %v233 = vunpack.c.l.b16 %v111
    %v234 = vunpack.c.h.b16 %v111
    %v235 = vunpack.c.l.b16 %v112
    %v236 = vunpack.c.h.b16 %v112
    %v237 = vunpack.c.l.b16 %v113
    %v238 = vunpack.c.h.b16 %v113
    %v239 = vunpack.c.l.b16 %v114
    %v240 = vunpack.c.h.b16 %v114
    %v241 = vunpack.c.l.b16 %v115
    %v242 = vunpack.c.h.b16 %v115
    %v243 = vunpack.c.l.b16 %v116
    %v244 = vunpack.c.h.b16 %v116
    %v245 = vunpack.c.l.b16 %v117
    %v246 = vunpack.c.h.b16 %v117
    %v247 = vunpack.c.l.b16 %v118
    %v248 = vunpack.c.h.b16 %v118
    %v249 = vunpack.c.l.b16 %v119
    %v250 = vunpack.c.h.b16 %v119
    %v251 = vunpack.c.l.b16 %v120
    %v252 = vunpack.c.h.b16 %v120
    %v253 = vunpack.c.l.b16 %v121
    %v254 = vunpack.c.h.b16 %v121
    %v255 = vunpack.c.l.b16 %v122
    %v256 = vunpack.c.h.b16 %v122
    %v257 = vunpack.c.l.b16 %v123
    %v258 = vunpack.c.h.b16 %v123
    %v259 = vpack.c.b16 %v197, %v195
    %v260 = vpack.c.b16 %v198, %v196
    %v261 = vpack.c.b16 %v201, %v199
    %v262 = vpack.c.b16 %v202, %v200
    %v263 = vpack.c.b16 %v205, %v203
    %v264 = vpack.c.b16 %v206, %v204
    %v265 = vpack.c.b16 %v209, %v207
    %v266 = vpack.c.b16 %v210, %v208
    %v267 = vpack.c.b16 %v213, %v211
    %v268 = vpack.c.b16 %v214, %v212
    %v269 = vpack.c.b16 %v217, %v215
    %v270 = vpack.c.b16 %v218, %v216
    %v271 = vpack.c.b16 %v221, %v219
    %v272 = vpack.c.b16 %v222, %v220
    %v273 = vpack.c.b16 %v225, %v223
    %v274 = vpack.c.b16 %v226, %v224
    %v275 = vpack.c.b16 %v229, %v227
    %v276 = vpack.c.b16 %v230, %v228
    %v277 = vpack.c.b16 %v233, %v231
    %v278 = vpack.c.b16 %v234, %v232
    %v279 = vpack.c.b16 %v237, %v235
    %v280 = vpack.c.b16 %v238, %v236
    %v281 = vpack.c.b16 %v241, %v239
    %v282 = vpack.c.b16 %v242, %v240
    %v283 = vpack.c.b16 %v245, %v243
    %v284 = vpack.c.b16 %v246, %v244
    %v285 = vpack.c.b16 %v249, %v247
    %v286 = vpack.c.b16 %v250, %v248
    %v287 = vpack.c.b16 %v253, %v251
    %v288 = vpack.c.b16 %v254, %v252
    %v289 = vpack.c.b16 %v257, %v255
    %v290 = vpack.c.b16 %v258, %v256
    %v355 = vunpack.c.l.b16 %v124
    %v356 = vunpack.c.l.b16 %v125
    %v357 = vunpack.c.l.b16 %v126
    %v358 = vunpack.c.l.b16 %v127
    %v359 = vunpack.c.l.b16 %v128
    %v360 = vunpack.c.l.b16 %v129
    %v361 = vunpack.c.l.b16 %v130
    %v362 = vunpack.c.l.b16 %v131
    %v363 = vunpack.c.l.b16 %v132
    %v364 = vunpack.c.l.b16 %v133
    %v365 = vunpack.c.l.b16 %v134
    %v366 = vunpack.c.l.b16 %v135
    %v367 = vunpack.c.l.b16 %v136
    %v368 = vunpack.c.l.b16 %v137
    %v369 = vunpack.c.l.b16 %v138
    %v370 = vunpack.c.l.b16 %v139
    %v371 = vunpack.c.l.b16 %v140
    %v372 = vunpack.c.l.b16 %v141
    %v373 = vunpack.c.l.b16 %v142
    %v374 = vunpack.c.l.b16 %v143
    %v375 = vunpack.c.l.b16 %v144
    %v376 = vunpack.c.l.b16 %v145
    %v377 = vunpack.c.l.b16 %v146
    %v378 = vunpack.c.l.b16 %v147
    %v379 = vunpack.c.l.b16 %v148
    %v380 = vunpack.c.l.b16 %v149
    %v381 = vunpack.c.l.b16 %v150
    %v382 = vunpack.c.l.b16 %v151
    %v383 = vunpack.c.l.b16 %v152
    %v384 = vunpack.c.l.b16 %v153
    %v385 = vunpack.c.l.b16 %v154
    %v386 = vunpack.c.l.b16 %v155
    %v387 = vpack.c.b16 %v356, %v355
    %v388 = vpack.c.b16 %v358, %v357
    %v389 = vpack.c.b16 %v360, %v359
    %v390 = vpack.c.b16 %v362, %v361
    %v391 = vpack.c.b16 %v364, %v363
    %v392 = vpack.c.b16 %v366, %v365
    %v393 = vpack.c.b16 %v368, %v367
    %v394 = vpack.c.b16 %v370, %v369
    %v395 = vpack.c.b16 %v372, %v371
    %v396 = vpack.c.b16 %v374, %v373
    %v397 = vpack.c.b16 %v376, %v375
    %v398 = vpack.c.b16 %v378, %v377
    %v399 = vpack.c.b16 %v380, %v379
    %v400 = vpack.c.b16 %v382, %v381
    %v401 = vpack.c.b16 %v384, %v383
    %v402 = vpack.c.b16 %v386, %v385
    %419 = vmatprep.subr.bf16.mxu0 0
    %420 = vmatpush1.bf16.msra.mxu0 %v387
    %421 = vmatprep.subr.bf16.mxu0 0
    %422 = vmatpush1.bf16.msra.mxu0 %v388
    %423 = vmatprep.subr.bf16.mxu0 0
    %424 = vmatpush1.bf16.msra.mxu0 %v389
    %425 = vmatprep.subr.bf16.mxu0 0
    %426 = vmatpush1.bf16.msra.mxu0 %v390
    %427 = vmatprep.subr.bf16.mxu0 0
    %428 = vmatpush1.bf16.msra.mxu0 %v391
    %429 = vmatprep.subr.bf16.mxu0 0
    %430 = vmatpush1.bf16.msra.mxu0 %v392
    %431 = vmatprep.subr.bf16.mxu0 0
    %432 = vmatpush1.bf16.msra.mxu0 %v393
    %433 = vmatprep.subr.bf16.mxu0 0
    %434 = vmatpush1.bf16.msra.mxu0 %v394
    %435 = vmatprep.subr.bf16.mxu0 0
    %436 = vmatpush1.bf16.msra.mxu0 %v395
    %437 = vmatprep.subr.bf16.mxu0 0
    %438 = vmatpush1.bf16.msra.mxu0 %v396
    %439 = vmatprep.subr.bf16.mxu0 0
    %440 = vmatpush1.bf16.msra.mxu0 %v397
    %441 = vmatprep.subr.bf16.mxu0 0
    %442 = vmatpush1.bf16.msra.mxu0 %v398
    %443 = vmatprep.subr.bf16.mxu0 0
    %444 = vmatpush1.bf16.msra.mxu0 %v399
    %445 = vmatprep.subr.bf16.mxu0 0
    %446 = vmatpush1.bf16.msra.mxu0 %v400
    %447 = vmatprep.subr.bf16.mxu0 0
    %448 = vmatpush1.bf16.msra.mxu0 %v401
    %449 = vmatprep.subr.bf16.mxu0 0
    %450 = vmatpush1.bf16.msra.mxu0 %v402
    %451 = vmatprep.mubr.bf16.mxu0 %v260
    %452 = vmatmul.mubr.bf16.gmra.mrb[0].mxu0 %v259
    %v453 = vpop.f32.mrb[0].mxu0
    %v454 = vadd.f32 %v161, %v453
    %v455 = vpop.f32.mrb[0].mxu0
    %v456 = vpop.f32.mrb[0].mxu0
    %v457 = vadd.f32 %v161, %v456
    %v458 = vpop.f32.mrb[0].mxu0
    %459 = vmatprep.mubr.bf16.mxu0 %v262
    %460 = vmatmul.mubr.bf16.gmra.mrb[0].mxu0 %v261
    %v461 = vpop.f32.mrb[0].mxu0
    %v462 = vadd.f32 %v161, %v461
    %v463 = vpop.f32.mrb[0].mxu0
    %v464 = vpop.f32.mrb[0].mxu0
    %v465 = vadd.f32 %v161, %v464
    %v466 = vpop.f32.mrb[0].mxu0
    %467 = vmatprep.mubr.bf16.mxu0 %v264
    %468 = vmatmul.mubr.bf16.gmra.mrb[0].mxu0 %v263
    %v469 = vpop.f32.mrb[0].mxu0
    %v470 = vadd.f32 %v161, %v469
    %v471 = vpop.f32.mrb[0].mxu0
    %v472 = vpop.f32.mrb[0].mxu0
    %v473 = vadd.f32 %v161, %v472
    %v474 = vpop.f32.mrb[0].mxu0
    %475 = vmatprep.mubr.bf16.mxu0 %v266
    %476 = vmatmul.mubr.bf16.gmra.mrb[0].mxu0 %v265
    %v477 = vpop.f32.mrb[0].mxu0
    %v478 = vadd.f32 %v161, %v477
    %v479 = vpop.f32.mrb[0].mxu0
    %v480 = vpop.f32.mrb[0].mxu0
    %v481 = vadd.f32 %v161, %v480
    %v482 = vpop.f32.mrb[0].mxu0
    %483 = vmatprep.mubr.bf16.mxu0 %v268
    %484 = vmatmul.mubr.bf16.gmra.mrb[0].mxu0 %v267
    %v485 = vpop.f32.mrb[0].mxu0
    %v486 = vadd.f32 %v161, %v485
    %v487 = vpop.f32.mrb[0].mxu0
    %v488 = vpop.f32.mrb[0].mxu0
    %v489 = vadd.f32 %v161, %v488
    %v490 = vpop.f32.mrb[0].mxu0
    %491 = vmatprep.mubr.bf16.mxu0 %v270
    %492 = vmatmul.mubr.bf16.gmra.mrb[0].mxu0 %v269
    %v493 = vpop.f32.mrb[0].mxu0
    %v494 = vadd.f32 %v161, %v493
    %v495 = vpop.f32.mrb[0].mxu0
    %v496 = vpop.f32.mrb[0].mxu0
    %v497 = vadd.f32 %v161, %v496
    %v498 = vpop.f32.mrb[0].mxu0
    %499 = vmatprep.mubr.bf16.mxu0 %v272
    %500 = vmatmul.mubr.bf16.gmra.mrb[0].mxu0 %v271
    %v501 = vpop.f32.mrb[0].mxu0
    %v502 = vadd.f32 %v161, %v501
    %v503 = vpop.f32.mrb[0].mxu0
    %v504 = vpop.f32.mrb[0].mxu0
    %v505 = vadd.f32 %v161, %v504
    %v506 = vpop.f32.mrb[0].mxu0
    %507 = vmatprep.mubr.bf16.mxu0 %v274
    %508 = vmatmul.mubr.bf16.gmra.mrb[0].mxu0 %v273
    %v509 = vpop.f32.mrb[0].mxu0
    %v510 = vadd.f32 %v161, %v509
    %v511 = vpop.f32.mrb[0].mxu0
    %v512 = vpop.f32.mrb[0].mxu0
    %v513 = vadd.f32 %v161, %v512
    %v514 = vpop.f32.mrb[0].mxu0
    %515 = vmatprep.mubr.bf16.mxu0 %v276
    %516 = vmatmul.mubr.bf16.gmra.mrb[0].mxu0 %v275
    %v517 = vpop.f32.mrb[0].mxu0
    %v518 = vadd.f32 %v161, %v517
    %v519 = vpop.f32.mrb[0].mxu0
    %v520 = vpop.f32.mrb[0].mxu0
    %v521 = vadd.f32 %v161, %v520
    %v522 = vpop.f32.mrb[0].mxu0
    %523 = vmatprep.mubr.bf16.mxu0 %v278
    %524 = vmatmul.mubr.bf16.gmra.mrb[0].mxu0 %v277
    %v525 = vpop.f32.mrb[0].mxu0
    %v526 = vadd.f32 %v161, %v525
    %v527 = vpop.f32.mrb[0].mxu0
    %v528 = vpop.f32.mrb[0].mxu0
    %v529 = vadd.f32 %v161, %v528
    %v530 = vpop.f32.mrb[0].mxu0
    %531 = vmatprep.mubr.bf16.mxu0 %v280
    %532 = vmatmul.mubr.bf16.gmra.mrb[0].mxu0 %v279
    %v533 = vpop.f32.mrb[0].mxu0
    %v534 = vadd.f32 %v161, %v533
    %v535 = vpop.f32.mrb[0].mxu0
    %v536 = vpop.f32.mrb[0].mxu0
    %v537 = vadd.f32 %v161, %v536
    %v538 = vpop.f32.mrb[0].mxu0
    %539 = vmatprep.mubr.bf16.mxu0 %v282
    %540 = vmatmul.mubr.bf16.gmra.mrb[0].mxu0 %v281
    %v541 = vpop.f32.mrb[0].mxu0
    %v542 = vadd.f32 %v161, %v541
    %v543 = vpop.f32.mrb[0].mxu0
    %v544 = vpop.f32.mrb[0].mxu0
    %v545 = vadd.f32 %v161, %v544
    %v546 = vpop.f32.mrb[0].mxu0
    %547 = vmatprep.mubr.bf16.mxu0 %v284
    %548 = vmatmul.mubr.bf16.gmra.mrb[0].mxu0 %v283
    %v549 = vpop.f32.mrb[0].mxu0
    %v550 = vadd.f32 %v161, %v549
    %v551 = vpop.f32.mrb[0].mxu0
    %v552 = vpop.f32.mrb[0].mxu0
    %v553 = vadd.f32 %v161, %v552
    %v554 = vpop.f32.mrb[0].mxu0
    %555 = vmatprep.mubr.bf16.mxu0 %v286
    %556 = vmatmul.mubr.bf16.gmra.mrb[0].mxu0 %v285
    %v557 = vpop.f32.mrb[0].mxu0
    %v558 = vadd.f32 %v161, %v557
    %v559 = vpop.f32.mrb[0].mxu0
    %v560 = vpop.f32.mrb[0].mxu0
    %v561 = vadd.f32 %v161, %v560
    %v562 = vpop.f32.mrb[0].mxu0
    %563 = vmatprep.mubr.bf16.mxu0 %v288
    %564 = vmatmul.mubr.bf16.gmra.mrb[0].mxu0 %v287
    %v565 = vpop.f32.mrb[0].mxu0
    %v566 = vadd.f32 %v161, %v565
    %v567 = vpop.f32.mrb[0].mxu0
    %v568 = vpop.f32.mrb[0].mxu0
    %v569 = vadd.f32 %v161, %v568
    %v570 = vpop.f32.mrb[0].mxu0
    %571 = vmatprep.mubr.bf16.mxu0 %v290
    %572 = vmatmul.mubr.bf16.gmra.mrb[0].mxu0 %v289
    %v573 = vpop.f32.mrb[0].mxu0
    %v574 = vadd.f32 %v161, %v573
    %v575 = vpop.f32.mrb[0].mxu0
    %v576 = vpop.f32.mrb[0].mxu0
    %v577 = vadd.f32 %v161, %v576
    %v578 = vpop.f32.mrb[0].mxu0
    %579 = vdwg.mxu0
    %v580 = vmax.f32 %v454, 0.0
    %v581 = vmax.f32 %v457, 0.0
    %v582 = vmax.f32 %v462, 0.0
    %v583 = vmax.f32 %v465, 0.0
    %v584 = vmax.f32 %v470, 0.0
    %v585 = vmax.f32 %v473, 0.0
    %v586 = vmax.f32 %v478, 0.0
    %v587 = vmax.f32 %v481, 0.0
    %v588 = vmax.f32 %v486, 0.0
    %v589 = vmax.f32 %v489, 0.0
    %v590 = vmax.f32 %v494, 0.0
    %v591 = vmax.f32 %v497, 0.0
    %v592 = vmax.f32 %v502, 0.0
    %v593 = vmax.f32 %v505, 0.0
    %v594 = vmax.f32 %v510, 0.0
    %v595 = vmax.f32 %v513, 0.0
    %v596 = vmax.f32 %v518, 0.0
    %v597 = vmax.f32 %v521, 0.0
    %v598 = vmax.f32 %v526, 0.0
    %v599 = vmax.f32 %v529, 0.0
    %v600 = vmax.f32 %v534, 0.0
    %v601 = vmax.f32 %v537, 0.0
    %v602 = vmax.f32 %v542, 0.0
    %v603 = vmax.f32 %v545, 0.0
    %v604 = vmax.f32 %v550, 0.0
    %v605 = vmax.f32 %v553, 0.0
    %v606 = vmax.f32 %v558, 0.0
    %v607 = vmax.f32 %v561, 0.0
    %v608 = vmax.f32 %v566, 0.0
    %v609 = vmax.f32 %v569, 0.0
    %v610 = vmax.f32 %v574, 0.0
    %v611 = vmax.f32 %v577, 0.0
    %v612 = vpack.c.bf16 %v581, %v580
    %v613 = vpack.c.bf16 %v583, %v582
    %v614 = vpack.c.bf16 %v585, %v584
    %v615 = vpack.c.bf16 %v587, %v586
    %v616 = vpack.c.bf16 %v589, %v588
    %v617 = vpack.c.bf16 %v591, %v590
    %v618 = vpack.c.bf16 %v593, %v592
    %v619 = vpack.c.bf16 %v595, %v594
    %v620 = vpack.c.bf16 %v597, %v596
    %v621 = vpack.c.bf16 %v599, %v598
    %v622 = vpack.c.bf16 %v601, %v600
    %v623 = vpack.c.bf16 %v603, %v602
    %v624 = vpack.c.bf16 %v605, %v604
    %v625 = vpack.c.bf16 %v607, %v606
    %v626 = vpack.c.bf16 %v609, %v608
    %v627 = vpack.c.bf16 %v611, %v610
    %v628 = vld [vmem:[#allocation5] sm:$0xf]
    %v629 = vld [vmem:[#allocation5 + $0x4] sm:$0xf]
    %v630 = vld [vmem:[#allocation5 + $0x8] sm:$0xf]
    %v631 = vld [vmem:[#allocation5 + $0xc] sm:$0xf]
    %v632 = vld [vmem:[#allocation5 + $0x10] sm:$0xf]
    %v633 = vld [vmem:[#allocation5 + $0x14] sm:$0xf]
    %v634 = vld [vmem:[#allocation5 + $0x18] sm:$0xf]
    %v635 = vld [vmem:[#allocation5 + $0x1c] sm:$0xf]
    %v636 = vld [vmem:[#allocation5 + $0x20] sm:$0xf]
    %v637 = vld [vmem:[#allocation5 + $0x24] sm:$0xf]
    %v638 = vld [vmem:[#allocation5 + $0x28] sm:$0xf]
    %v639 = vld [vmem:[#allocation5 + $0x2c] sm:$0xf]
    %v640 = vld [vmem:[#allocation5 + $0x30] sm:$0xf]
    %v641 = vld [vmem:[#allocation5 + $0x34] sm:$0xf]
    %v642 = vld [vmem:[#allocation5 + $0x38] sm:$0xf]
    %v643 = vld [vmem:[#allocation5 + $0x3c] sm:$0xf]
    %v644 = vld [vmem:[%s5] sm:$0x1]
    %v646 = vlaneseq
    %v647 = vshrl.u32 %v646, 7
    %v648 = vsub.s32 0, %v647
    %v649 = vrot.slane %v644, %v648
    %v667 = vunpack.c.l.b16 %v628
    %v668 = vunpack.c.l.b16 %v629
    %v669 = vunpack.c.l.b16 %v630
    %v670 = vunpack.c.l.b16 %v631
    %v671 = vunpack.c.l.b16 %v632
    %v672 = vunpack.c.l.b16 %v633
    %v673 = vunpack.c.l.b16 %v634
    %v674 = vunpack.c.l.b16 %v635
    %v675 = vunpack.c.l.b16 %v636
    %v676 = vunpack.c.l.b16 %v637
    %v677 = vunpack.c.l.b16 %v638
    %v678 = vunpack.c.l.b16 %v639
    %v679 = vunpack.c.l.b16 %v640
    %v680 = vunpack.c.l.b16 %v641
    %v681 = vunpack.c.l.b16 %v642
    %v682 = vunpack.c.l.b16 %v643
    %v683 = vpack.c.b16 %v668, %v667
    %v684 = vpack.c.b16 %v670, %v669
    %v685 = vpack.c.b16 %v672, %v671
    %v686 = vpack.c.b16 %v674, %v673
    %v687 = vpack.c.b16 %v676, %v675
    %v688 = vpack.c.b16 %v678, %v677
    %v689 = vpack.c.b16 %v680, %v679
    %v690 = vpack.c.b16 %v682, %v681
    %699 = vmatprep.subr.bf16.mxu0 0
    %700 = vmatpush1.bf16.msra.mxu0 %v683
    %701 = vmatprep.subr.bf16.mxu0 0
    %702 = vmatpush1.bf16.msra.mxu0 %v684
    %703 = vmatprep.subr.bf16.mxu0 0
    %704 = vmatpush1.bf16.msra.mxu0 %v685
    %705 = vmatprep.subr.bf16.mxu0 0
    %706 = vmatpush1.bf16.msra.mxu0 %v686
    %707 = vmatprep.subr.bf16.mxu0 0
    %708 = vmatpush1.bf16.msra.mxu0 %v687
    %709 = vmatprep.subr.bf16.mxu0 0
    %710 = vmatpush1.bf16.msra.mxu0 %v688
    %711 = vmatprep.subr.bf16.mxu0 0
    %712 = vmatpush1.bf16.msra.mxu0 %v689
    %713 = vmatprep.subr.bf16.mxu0 0
    %714 = vmatpush1.bf16.msra.mxu0 %v690
    %715 = vmatprep.subr.bf16.mxu0 0
    %716 = vmatpush1.bf16.msra.mxu0 0
    %717 = vmatprep.subr.bf16.mxu0 0
    %718 = vmatpush1.bf16.msra.mxu0 0
    %719 = vmatprep.subr.bf16.mxu0 0
    %720 = vmatpush1.bf16.msra.mxu0 0
    %721 = vmatprep.subr.bf16.mxu0 0
    %722 = vmatpush1.bf16.msra.mxu0 0
    %723 = vmatprep.subr.bf16.mxu0 0
    %724 = vmatpush1.bf16.msra.mxu0 0
    %725 = vmatprep.subr.bf16.mxu0 0
    %726 = vmatpush1.bf16.msra.mxu0 0
    %727 = vmatprep.subr.bf16.mxu0 0
    %728 = vmatpush1.bf16.msra.mxu0 0
    %729 = vmatprep.subr.bf16.mxu0 0
    %730 = vmatpush1.bf16.msra.mxu0 0
    %731 = vmatprep.mubr.bf16.mxu0 0
    %732 = vmatmul.mubr.bf16.gmra.mrb[0].mxu0 %v612
    %v733 = vpop.f32.mrb[0].mxu0
    %v734 = vadd.f32 %v649, %v733
    %v735 = vpop.f32.mrb[0].mxu0
    %v736 = vpop.f32.mrb[0].mxu0
    %v737 = vadd.f32 %v649, %v736
    %v738 = vpop.f32.mrb[0].mxu0
    %739 = vmatprep.mubr.bf16.mxu0 0
    %740 = vmatmul.mubr.bf16.gmra.mrb[0].mxu0 %v613
    %v741 = vpop.f32.mrb[0].mxu0
    %v742 = vadd.f32 %v649, %v741
    %v743 = vpop.f32.mrb[0].mxu0
    %v744 = vpop.f32.mrb[0].mxu0
    %v745 = vadd.f32 %v649, %v744
    %v746 = vpop.f32.mrb[0].mxu0
    %747 = vmatprep.mubr.bf16.mxu0 0
    %748 = vmatmul.mubr.bf16.gmra.mrb[0].mxu0 %v614
    %v749 = vpop.f32.mrb[0].mxu0
    %v750 = vadd.f32 %v649, %v749
    %v751 = vpop.f32.mrb[0].mxu0
    %v752 = vpop.f32.mrb[0].mxu0
    %v753 = vadd.f32 %v649, %v752
    %v754 = vpop.f32.mrb[0].mxu0
    %755 = vmatprep.mubr.bf16.mxu0 0
    %756 = vmatmul.mubr.bf16.gmra.mrb[0].mxu0 %v615
    %v757 = vpop.f32.mrb[0].mxu0
    %v758 = vadd.f32 %v649, %v757
    %v759 = vpop.f32.mrb[0].mxu0
    %v760 = vpop.f32.mrb[0].mxu0
    %v761 = vadd.f32 %v649, %v760
    %v762 = vpop.f32.mrb[0].mxu0
    %763 = vmatprep.mubr.bf16.mxu0 0
    %764 = vmatmul.mubr.bf16.gmra.mrb[0].mxu0 %v616
    %v765 = vpop.f32.mrb[0].mxu0
    %v766 = vadd.f32 %v649, %v765
    %v767 = vpop.f32.mrb[0].mxu0
    %v768 = vpop.f32.mrb[0].mxu0
    %v769 = vadd.f32 %v649, %v768
    %v770 = vpop.f32.mrb[0].mxu0
    %771 = vmatprep.mubr.bf16.mxu0 0
    %772 = vmatmul.mubr.bf16.gmra.mrb[0].mxu0 %v617
    %v773 = vpop.f32.mrb[0].mxu0
    %v774 = vadd.f32 %v649, %v773
    %v775 = vpop.f32.mrb[0].mxu0
    %v776 = vpop.f32.mrb[0].mxu0
    %v777 = vadd.f32 %v649, %v776
    %v778 = vpop.f32.mrb[0].mxu0
    %779 = vmatprep.mubr.bf16.mxu0 0
    %780 = vmatmul.mubr.bf16.gmra.mrb[0].mxu0 %v618
    %v781 = vpop.f32.mrb[0].mxu0
    %v782 = vadd.f32 %v649, %v781
    %v783 = vpop.f32.mrb[0].mxu0
    %v784 = vpop.f32.mrb[0].mxu0
    %v785 = vadd.f32 %v649, %v784
    %v786 = vpop.f32.mrb[0].mxu0
    %787 = vmatprep.mubr.bf16.mxu0 0
    %788 = vmatmul.mubr.bf16.gmra.mrb[0].mxu0 %v619
    %v789 = vpop.f32.mrb[0].mxu0
    %v790 = vadd.f32 %v649, %v789
    %v791 = vpop.f32.mrb[0].mxu0
    %v792 = vpop.f32.mrb[0].mxu0
    %v793 = vadd.f32 %v649, %v792
    %v794 = vpop.f32.mrb[0].mxu0
    %795 = vmatprep.mubr.bf16.mxu0 0
    %796 = vmatmul.mubr.bf16.gmra.mrb[0].mxu0 %v620
    %v797 = vpop.f32.mrb[0].mxu0
    %v798 = vadd.f32 %v649, %v797
    %v799 = vpop.f32.mrb[0].mxu0
    %v800 = vpop.f32.mrb[0].mxu0
    %v801 = vadd.f32 %v649, %v800
    %v802 = vpop.f32.mrb[0].mxu0
    %803 = vmatprep.mubr.bf16.mxu0 0
    %804 = vmatmul.mubr.bf16.gmra.mrb[0].mxu0 %v621
    %v805 = vpop.f32.mrb[0].mxu0
    %v806 = vadd.f32 %v649, %v805
    %v807 = vpop.f32.mrb[0].mxu0
    %v808 = vpop.f32.mrb[0].mxu0
    %v809 = vadd.f32 %v649, %v808
    %v810 = vpop.f32.mrb[0].mxu0
    %811 = vmatprep.mubr.bf16.mxu0 0
    %812 = vmatmul.mubr.bf16.gmra.mrb[0].mxu0 %v622
    %v813 = vpop.f32.mrb[0].mxu0
    %v814 = vadd.f32 %v649, %v813
    %v815 = vpop.f32.mrb[0].mxu0
    %v816 = vpop.f32.mrb[0].mxu0
    %v817 = vadd.f32 %v649, %v816
    %v818 = vpop.f32.mrb[0].mxu0
    %819 = vmatprep.mubr.bf16.mxu0 0
    %820 = vmatmul.mubr.bf16.gmra.mrb[0].mxu0 %v623
    %v821 = vpop.f32.mrb[0].mxu0
    %v822 = vadd.f32 %v649, %v821
    %v823 = vpop.f32.mrb[0].mxu0
    %v824 = vpop.f32.mrb[0].mxu0
    %v825 = vadd.f32 %v649, %v824
    %v826 = vpop.f32.mrb[0].mxu0
    %827 = vmatprep.mubr.bf16.mxu0 0
    %828 = vmatmul.mubr.bf16.gmra.mrb[0].mxu0 %v624
    %v829 = vpop.f32.mrb[0].mxu0
    %v830 = vadd.f32 %v649, %v829
    %v831 = vpop.f32.mrb[0].mxu0
    %v832 = vpop.f32.mrb[0].mxu0
    %v833 = vadd.f32 %v649, %v832
    %v834 = vpop.f32.mrb[0].mxu0
    %835 = vmatprep.mubr.bf16.mxu0 0
    %836 = vmatmul.mubr.bf16.gmra.mrb[0].mxu0 %v625
    %v837 = vpop.f32.mrb[0].mxu0
    %v838 = vadd.f32 %v649, %v837
    %v839 = vpop.f32.mrb[0].mxu0
    %v840 = vpop.f32.mrb[0].mxu0
    %v841 = vadd.f32 %v649, %v840
    %v842 = vpop.f32.mrb[0].mxu0
    %843 = vmatprep.mubr.bf16.mxu0 0
    %844 = vmatmul.mubr.bf16.gmra.mrb[0].mxu0 %v626
    %v845 = vpop.f32.mrb[0].mxu0
    %v846 = vadd.f32 %v649, %v845
    %v847 = vpop.f32.mrb[0].mxu0
    %v848 = vpop.f32.mrb[0].mxu0
    %v849 = vadd.f32 %v649, %v848
    %v850 = vpop.f32.mrb[0].mxu0
    %851 = vmatprep.mubr.bf16.mxu0 0
    %852 = vmatmul.mubr.bf16.gmra.mrb[0].mxu0 %v627
    %v853 = vpop.f32.mrb[0].mxu0
    %v854 = vadd.f32 %v649, %v853
    %v855 = vpop.f32.mrb[0].mxu0
    %v856 = vpop.f32.mrb[0].mxu0
    %v857 = vadd.f32 %v649, %v856
    %v858 = vpop.f32.mrb[0].mxu0
    %859 = vdwg.mxu0
    %v860 = vmax.f32 %v734, 0.0
    %v861 = vmax.f32 %v737, 0.0
    %v862 = vmax.f32 %v742, 0.0
    %v863 = vmax.f32 %v745, 0.0
    %v864 = vmax.f32 %v750, 0.0
    %v865 = vmax.f32 %v753, 0.0
    %v866 = vmax.f32 %v758, 0.0
    %v867 = vmax.f32 %v761, 0.0
    %v868 = vmax.f32 %v766, 0.0
    %v869 = vmax.f32 %v769, 0.0
    %v870 = vmax.f32 %v774, 0.0
    %v871 = vmax.f32 %v777, 0.0
    %v872 = vmax.f32 %v782, 0.0
    %v873 = vmax.f32 %v785, 0.0
    %v874 = vmax.f32 %v790, 0.0
    %v875 = vmax.f32 %v793, 0.0
    %v876 = vmax.f32 %v798, 0.0
    %v877 = vmax.f32 %v801, 0.0
    %v878 = vmax.f32 %v806, 0.0
    %v879 = vmax.f32 %v809, 0.0
    %v880 = vmax.f32 %v814, 0.0
    %v881 = vmax.f32 %v817, 0.0
    %v882 = vmax.f32 %v822, 0.0
    %v883 = vmax.f32 %v825, 0.0
    %v884 = vmax.f32 %v830, 0.0
    %v885 = vmax.f32 %v833, 0.0
    %v886 = vmax.f32 %v838, 0.0
    %v887 = vmax.f32 %v841, 0.0
    %v888 = vmax.f32 %v846, 0.0
    %v889 = vmax.f32 %v849, 0.0
    %v890 = vmax.f32 %v854, 0.0
    %v891 = vmax.f32 %v857, 0.0
    %v892 = vpack.c.bf16 %v861, %v860
    %v893 = vpack.c.bf16 %v863, %v862
    %v894 = vpack.c.bf16 %v865, %v864
    %v895 = vpack.c.bf16 %v867, %v866
    %v896 = vpack.c.bf16 %v869, %v868
    %v897 = vpack.c.bf16 %v871, %v870
    %v898 = vpack.c.bf16 %v873, %v872
    %v899 = vpack.c.bf16 %v875, %v874
    %v900 = vpack.c.bf16 %v877, %v876
    %v901 = vpack.c.bf16 %v879, %v878
    %v902 = vpack.c.bf16 %v881, %v880
    %v903 = vpack.c.bf16 %v883, %v882
    %v904 = vpack.c.bf16 %v885, %v884
    %v905 = vpack.c.bf16 %v887, %v886
    %v906 = vpack.c.bf16 %v889, %v888
    %v907 = vpack.c.bf16 %v891, %v890
    %v908 = vld [vmem:[%s6] sm:$0xf]
    %v909 = vld [vmem:[%s6 + $0x4] sm:$0xf]
    %v910 = vld [vmem:[%s6 + $0x8] sm:$0xf]
    %v911 = vld [vmem:[%s6 + $0xc] sm:$0xf]
    %v912 = vld [vmem:[%s6 + $0x10] sm:$0xf]
    %v913 = vld [vmem:[%s6 + $0x14] sm:$0xf]
    %v914 = vld [vmem:[%s6 + $0x18] sm:$0xf]
    %v915 = vld [vmem:[%s6 + $0x1c] sm:$0xf]
    %v916 = vld [vmem:[%s6 + $0x20] sm:$0xf]
    %v917 = vld [vmem:[%s6 + $0x24] sm:$0xf]
    %v918 = vld [vmem:[%s6 + $0x28] sm:$0xf]
    %v919 = vld [vmem:[%s6 + $0x2c] sm:$0xf]
    %v920 = vld [vmem:[%s6 + $0x30] sm:$0xf]
    %v921 = vld [vmem:[%s6 + $0x34] sm:$0xf]
    %v922 = vld [vmem:[%s6 + $0x38] sm:$0xf]
    %v923 = vld [vmem:[%s6 + $0x3c] sm:$0xf]
    %v924 = vld [vmem:[%s7] sm:$0x1]
    %v926 = vlaneseq
    %v927 = vshrl.u32 %v926, 7
    %v928 = vsub.s32 0, %v927
    %v929 = vrot.slane %v924, %v928
    %v947 = vunpack.c.l.b16 %v908
    %v948 = vunpack.c.l.b16 %v909
    %v949 = vunpack.c.l.b16 %v910
    %v950 = vunpack.c.l.b16 %v911
    %v951 = vunpack.c.l.b16 %v912
    %v952 = vunpack.c.l.b16 %v913
    %v953 = vunpack.c.l.b16 %v914
    %v954 = vunpack.c.l.b16 %v915
    %v955 = vunpack.c.l.b16 %v916
    %v956 = vunpack.c.l.b16 %v917
    %v957 = vunpack.c.l.b16 %v918
    %v958 = vunpack.c.l.b16 %v919
    %v959 = vunpack.c.l.b16 %v920
    %v960 = vunpack.c.l.b16 %v921
    %v961 = vunpack.c.l.b16 %v922
    %v962 = vunpack.c.l.b16 %v923
    %v963 = vpack.c.b16 %v948, %v947
    %v964 = vpack.c.b16 %v950, %v949
    %v965 = vpack.c.b16 %v952, %v951
    %v966 = vpack.c.b16 %v954, %v953
    %v967 = vpack.c.b16 %v956, %v955
    %v968 = vpack.c.b16 %v958, %v957
    %v969 = vpack.c.b16 %v960, %v959
    %v970 = vpack.c.b16 %v962, %v961
    %979 = vmatprep.subr.bf16.mxu0 0
    %980 = vmatpush1.bf16.msra.mxu0 %v963
    %981 = vmatprep.subr.bf16.mxu0 0
    %982 = vmatpush1.bf16.msra.mxu0 %v964
    %983 = vmatprep.subr.bf16.mxu0 0
    %984 = vmatpush1.bf16.msra.mxu0 %v965
    %985 = vmatprep.subr.bf16.mxu0 0
    %986 = vmatpush1.bf16.msra.mxu0 %v966
    %987 = vmatprep.subr.bf16.mxu0 0
    %988 = vmatpush1.bf16.msra.mxu0 %v967
    %989 = vmatprep.subr.bf16.mxu0 0
    %990 = vmatpush1.bf16.msra.mxu0 %v968
    %991 = vmatprep.subr.bf16.mxu0 0
    %992 = vmatpush1.bf16.msra.mxu0 %v969
    %993 = vmatprep.subr.bf16.mxu0 0
    %994 = vmatpush1.bf16.msra.mxu0 %v970
    %995 = vmatprep.subr.bf16.mxu0 0
    %996 = vmatpush1.bf16.msra.mxu0 0
    %997 = vmatprep.subr.bf16.mxu0 0
    %998 = vmatpush1.bf16.msra.mxu0 0
    %999 = vmatprep.subr.bf16.mxu0 0
    %1000 = vmatpush1.bf16.msra.mxu0 0
    %1001 = vmatprep.subr.bf16.mxu0 0
    %1002 = vmatpush1.bf16.msra.mxu0 0
    %1003 = vmatprep.subr.bf16.mxu0 0
    %1004 = vmatpush1.bf16.msra.mxu0 0
    %1005 = vmatprep.subr.bf16.mxu0 0
    %1006 = vmatpush1.bf16.msra.mxu0 0
    %1007 = vmatprep.subr.bf16.mxu0 0
    %1008 = vmatpush1.bf16.msra.mxu0 0
    %1009 = vmatprep.subr.bf16.mxu0 0
    %1010 = vmatpush1.bf16.msra.mxu0 0
    %1011 = vmatprep.mubr.bf16.mxu0 0
    %1012 = vmatmul.mubr.bf16.gmra.mrb[0].mxu0 %v892
    %v1013 = vpop.f32.mrb[0].mxu0
    %v1014 = vadd.f32 %v929, %v1013
    %v1015 = vpop.f32.mrb[0].mxu0
    %v1016 = vpop.f32.mrb[0].mxu0
    %v1017 = vadd.f32 %v929, %v1016
    %v1018 = vpop.f32.mrb[0].mxu0
    %1019 = vmatprep.mubr.bf16.mxu0 0
    %1020 = vmatmul.mubr.bf16.gmra.mrb[0].mxu0 %v893
    %v1021 = vpop.f32.mrb[0].mxu0
    %v1022 = vadd.f32 %v929, %v1021
    %v1023 = vpop.f32.mrb[0].mxu0
    %v1024 = vpop.f32.mrb[0].mxu0
    %v1025 = vadd.f32 %v929, %v1024
    %v1026 = vpop.f32.mrb[0].mxu0
    %1027 = vmatprep.mubr.bf16.mxu0 0
    %1028 = vmatmul.mubr.bf16.gmra.mrb[0].mxu0 %v894
    %v1029 = vpop.f32.mrb[0].mxu0
    %v1030 = vadd.f32 %v929, %v1029
    %v1031 = vpop.f32.mrb[0].mxu0
    %v1032 = vpop.f32.mrb[0].mxu0
    %v1033 = vadd.f32 %v929, %v1032
    %v1034 = vpop.f32.mrb[0].mxu0
    %1035 = vmatprep.mubr.bf16.mxu0 0
    %1036 = vmatmul.mubr.bf16.gmra.mrb[0].mxu0 %v895
    %v1037 = vpop.f32.mrb[0].mxu0
    %v1038 = vadd.f32 %v929, %v1037
    %v1039 = vpop.f32.mrb[0].mxu0
    %v1040 = vpop.f32.mrb[0].mxu0
    %v1041 = vadd.f32 %v929, %v1040
    %v1042 = vpop.f32.mrb[0].mxu0
    %1043 = vmatprep.mubr.bf16.mxu0 0
    %1044 = vmatmul.mubr.bf16.gmra.mrb[0].mxu0 %v896
    %v1045 = vpop.f32.mrb[0].mxu0
    %v1046 = vadd.f32 %v929, %v1045
    %v1047 = vpop.f32.mrb[0].mxu0
    %v1048 = vpop.f32.mrb[0].mxu0
    %v1049 = vadd.f32 %v929, %v1048
    %v1050 = vpop.f32.mrb[0].mxu0
    %1051 = vmatprep.mubr.bf16.mxu0 0
    %1052 = vmatmul.mubr.bf16.gmra.mrb[0].mxu0 %v897
    %v1053 = vpop.f32.mrb[0].mxu0
    %v1054 = vadd.f32 %v929, %v1053
    %v1055 = vpop.f32.mrb[0].mxu0
    %v1056 = vpop.f32.mrb[0].mxu0
    %v1057 = vadd.f32 %v929, %v1056
    %v1058 = vpop.f32.mrb[0].mxu0
    %1059 = vmatprep.mubr.bf16.mxu0 0
    %1060 = vmatmul.mubr.bf16.gmra.mrb[0].mxu0 %v898
    %v1061 = vpop.f32.mrb[0].mxu0
    %v1062 = vadd.f32 %v929, %v1061
    %v1063 = vpop.f32.mrb[0].mxu0
    %v1064 = vpop.f32.mrb[0].mxu0
    %v1065 = vadd.f32 %v929, %v1064
    %v1066 = vpop.f32.mrb[0].mxu0
    %1067 = vmatprep.mubr.bf16.mxu0 0
    %1068 = vmatmul.mubr.bf16.gmra.mrb[0].mxu0 %v899
    %v1069 = vpop.f32.mrb[0].mxu0
    %v1070 = vadd.f32 %v929, %v1069
    %v1071 = vpop.f32.mrb[0].mxu0
    %v1072 = vpop.f32.mrb[0].mxu0
    %v1073 = vadd.f32 %v929, %v1072
    %v1074 = vpop.f32.mrb[0].mxu0
    %1075 = vmatprep.mubr.bf16.mxu0 0
    %1076 = vmatmul.mubr.bf16.gmra.mrb[0].mxu0 %v900
    %v1077 = vpop.f32.mrb[0].mxu0
    %v1078 = vadd.f32 %v929, %v1077
    %v1079 = vpop.f32.mrb[0].mxu0
    %v1080 = vpop.f32.mrb[0].mxu0
    %v1081 = vadd.f32 %v929, %v1080
    %v1082 = vpop.f32.mrb[0].mxu0
    %1083 = vmatprep.mubr.bf16.mxu0 0
    %1084 = vmatmul.mubr.bf16.gmra.mrb[0].mxu0 %v901
    %v1085 = vpop.f32.mrb[0].mxu0
    %v1086 = vadd.f32 %v929, %v1085
    %v1087 = vpop.f32.mrb[0].mxu0
    %v1088 = vpop.f32.mrb[0].mxu0
    %v1089 = vadd.f32 %v929, %v1088
    %v1090 = vpop.f32.mrb[0].mxu0
    %1091 = vmatprep.mubr.bf16.mxu0 0
    %1092 = vmatmul.mubr.bf16.gmra.mrb[0].mxu0 %v902
    %v1093 = vpop.f32.mrb[0].mxu0
    %v1094 = vadd.f32 %v929, %v1093
    %v1095 = vpop.f32.mrb[0].mxu0
    %v1096 = vpop.f32.mrb[0].mxu0
    %v1097 = vadd.f32 %v929, %v1096
    %v1098 = vpop.f32.mrb[0].mxu0
    %1099 = vmatprep.mubr.bf16.mxu0 0
    %1100 = vmatmul.mubr.bf16.gmra.mrb[0].mxu0 %v903
    %v1101 = vpop.f32.mrb[0].mxu0
    %v1102 = vadd.f32 %v929, %v1101
    %v1103 = vpop.f32.mrb[0].mxu0
    %v1104 = vpop.f32.mrb[0].mxu0
    %v1105 = vadd.f32 %v929, %v1104
    %v1106 = vpop.f32.mrb[0].mxu0
    %1107 = vmatprep.mubr.bf16.mxu0 0
    %1108 = vmatmul.mubr.bf16.gmra.mrb[0].mxu0 %v904
    %v1109 = vpop.f32.mrb[0].mxu0
    %v1110 = vadd.f32 %v929, %v1109
    %v1111 = vpop.f32.mrb[0].mxu0
    %v1112 = vpop.f32.mrb[0].mxu0
    %v1113 = vadd.f32 %v929, %v1112
    %v1114 = vpop.f32.mrb[0].mxu0
    %1115 = vmatprep.mubr.bf16.mxu0 0
    %1116 = vmatmul.mubr.bf16.gmra.mrb[0].mxu0 %v905
    %v1117 = vpop.f32.mrb[0].mxu0
    %v1118 = vadd.f32 %v929, %v1117
    %v1119 = vpop.f32.mrb[0].mxu0
    %v1120 = vpop.f32.mrb[0].mxu0
    %v1121 = vadd.f32 %v929, %v1120
    %v1122 = vpop.f32.mrb[0].mxu0
    %1123 = vmatprep.mubr.bf16.mxu0 0
    %1124 = vmatmul.mubr.bf16.gmra.mrb[0].mxu0 %v906
    %v1125 = vpop.f32.mrb[0].mxu0
    %v1126 = vadd.f32 %v929, %v1125
    %v1127 = vpop.f32.mrb[0].mxu0
    %v1128 = vpop.f32.mrb[0].mxu0
    %v1129 = vadd.f32 %v929, %v1128
    %v1130 = vpop.f32.mrb[0].mxu0
    %1131 = vmatprep.mubr.bf16.mxu0 0
    %1132 = vmatmul.mubr.bf16.gmra.mrb[0].mxu0 %v907
    %v1133 = vpop.f32.mrb[0].mxu0
    %v1134 = vadd.f32 %v929, %v1133
    %v1135 = vpop.f32.mrb[0].mxu0
    %v1136 = vpop.f32.mrb[0].mxu0
    %v1137 = vadd.f32 %v929, %v1136
    %v1138 = vpop.f32.mrb[0].mxu0
    %1139 = vdwg.mxu0
    %v1140 = vld [vmem:[%s1] sm:$0xff]
    %v1141 = vld [vmem:[%s1 + $0x8] sm:$0xff]
    %v1142 = vld [vmem:[%s1 + $0x10] sm:$0xff]
    %v1143 = vld [vmem:[%s1 + $0x18] sm:$0xff]
    %v1144 = vld [vmem:[%s1 + $0x20] sm:$0xff]
    %v1145 = vld [vmem:[%s1 + $0x28] sm:$0xff]
    %v1146 = vld [vmem:[%s1 + $0x30] sm:$0xff]
    %v1147 = vld [vmem:[%s1 + $0x38] sm:$0xff]
    %v1148 = vld [vmem:[%s1 + $0x40] sm:$0xff]
    %v1149 = vld [vmem:[%s1 + $0x48] sm:$0xff]
    %v1150 = vld [vmem:[%s1 + $0x50] sm:$0xff]
    %v1151 = vld [vmem:[%s1 + $0x58] sm:$0xff]
    %v1152 = vld [vmem:[%s1 + $0x60] sm:$0xff]
    %v1153 = vld [vmem:[%s1 + $0x68] sm:$0xff]
    %v1154 = vld [vmem:[%s1 + $0x70] sm:$0xff]
    %v1155 = vld [vmem:[%s1 + $0x78] sm:$0xff]
    %v1156 = vld [vmem:[%s1 + $0x80] sm:$0xff]
    %v1157 = vld [vmem:[%s1 + $0x88] sm:$0xff]
    %v1158 = vld [vmem:[%s1 + $0x90] sm:$0xff]
    %v1159 = vld [vmem:[%s1 + $0x98] sm:$0xff]
    %v1160 = vld [vmem:[%s1 + $0xa0] sm:$0xff]
    %v1161 = vld [vmem:[%s1 + $0xa8] sm:$0xff]
    %v1162 = vld [vmem:[%s1 + $0xb0] sm:$0xff]
    %v1163 = vld [vmem:[%s1 + $0xb8] sm:$0xff]
    %v1164 = vld [vmem:[%s1 + $0xc0] sm:$0xff]
    %v1165 = vld [vmem:[%s1 + $0xc8] sm:$0xff]
    %v1166 = vld [vmem:[%s1 + $0xd0] sm:$0xff]
    %v1167 = vld [vmem:[%s1 + $0xd8] sm:$0xff]
    %v1168 = vld [vmem:[%s1 + $0xe0] sm:$0xff]
    %v1169 = vld [vmem:[%s1 + $0xe8] sm:$0xff]
    %v1170 = vld [vmem:[%s1 + $0xf0] sm:$0xff]
    %v1171 = vld [vmem:[%s1 + $0xf8] sm:$0xff]
    %v1172 = vmul.f32 %v1014, 0.5
    %v1173 = vmul.f32 %v1017, 0.5
    %v1174 = vmul.f32 %v1022, 0.5
    %v1175 = vmul.f32 %v1025, 0.5
    %v1176 = vmul.f32 %v1030, 0.5
    %v1177 = vmul.f32 %v1033, 0.5
    %v1178 = vmul.f32 %v1038, 0.5
    %v1179 = vmul.f32 %v1041, 0.5
    %v1180 = vmul.f32 %v1046, 0.5
    %v1181 = vmul.f32 %v1049, 0.5
    %v1182 = vmul.f32 %v1054, 0.5
    %v1183 = vmul.f32 %v1057, 0.5
    %v1184 = vmul.f32 %v1062, 0.5
    %v1185 = vmul.f32 %v1065, 0.5
    %v1186 = vmul.f32 %v1070, 0.5
    %v1187 = vmul.f32 %v1073, 0.5
    %v1188 = vmul.f32 %v1078, 0.5
    %v1189 = vmul.f32 %v1081, 0.5
    %v1190 = vmul.f32 %v1086, 0.5
    %v1191 = vmul.f32 %v1089, 0.5
    %v1192 = vmul.f32 %v1094, 0.5
    %v1193 = vmul.f32 %v1097, 0.5
    %v1194 = vmul.f32 %v1102, 0.5
    %v1195 = vmul.f32 %v1105, 0.5
    %v1196 = vmul.f32 %v1110, 0.5
    %v1197 = vmul.f32 %v1113, 0.5
    %v1198 = vmul.f32 %v1118, 0.5
    %v1199 = vmul.f32 %v1121, 0.5
    %v1200 = vmul.f32 %v1126, 0.5
    %v1201 = vmul.f32 %v1129, 0.5
    %v1202 = vmul.f32 %v1134, 0.5
    %v1203 = vmul.f32 %v1137, 0.5
    %v1204 = vmul.f32 %v1172, 1.442695
    %v1205 = vpow.pop %v1204
    %v1206 = vmul.f32 %v1173, 1.442695
    %v1207 = vpow.pop %v1206
    %v1208 = vmul.f32 %v1174, 1.442695
    %v1209 = vpow.pop %v1208
    %v1210 = vmul.f32 %v1175, 1.442695
    %v1211 = vpow.pop %v1210
    %v1212 = vmul.f32 %v1176, 1.442695
    %v1213 = vpow.pop %v1212
    %v1214 = vmul.f32 %v1177, 1.442695
    %v1215 = vpow.pop %v1214
    %v1216 = vmul.f32 %v1178, 1.442695
    %v1217 = vpow.pop %v1216
    %v1218 = vmul.f32 %v1179, 1.442695
    %v1219 = vpow.pop %v1218
    %v1220 = vmul.f32 %v1180, 1.442695
    %v1221 = vpow.pop %v1220
    %v1222 = vmul.f32 %v1181, 1.442695
    %v1223 = vpow.pop %v1222
    %v1224 = vmul.f32 %v1182, 1.442695
    %v1225 = vpow.pop %v1224
    %v1226 = vmul.f32 %v1183, 1.442695
    %v1227 = vpow.pop %v1226
    %v1228 = vmul.f32 %v1184, 1.442695
    %v1229 = vpow.pop %v1228
    %v1230 = vmul.f32 %v1185, 1.442695
    %v1231 = vpow.pop %v1230
    %v1232 = vmul.f32 %v1186, 1.442695
    %v1233 = vpow.pop %v1232
    %v1234 = vmul.f32 %v1187, 1.442695
    %v1235 = vpow.pop %v1234
    %v1236 = vmul.f32 %v1188, 1.442695
    %v1237 = vpow.pop %v1236
    %v1238 = vmul.f32 %v1189, 1.442695
    %v1239 = vpow.pop %v1238
    %v1240 = vmul.f32 %v1190, 1.442695
    %v1241 = vpow.pop %v1240
    %v1242 = vmul.f32 %v1191, 1.442695
    %v1243 = vpow.pop %v1242
    %v1244 = vmul.f32 %v1192, 1.442695
    %v1245 = vpow.pop %v1244
    %v1246 = vmul.f32 %v1193, 1.442695
    %v1247 = vpow.pop %v1246
    %v1248 = vmul.f32 %v1194, 1.442695
    %v1249 = vpow.pop %v1248
    %v1250 = vmul.f32 %v1195, 1.442695
    %v1251 = vpow.pop %v1250
    %v1252 = vmul.f32 %v1196, 1.442695
    %v1253 = vpow.pop %v1252
    %v1254 = vmul.f32 %v1197, 1.442695
    %v1255 = vpow.pop %v1254
    %v1256 = vmul.f32 %v1198, 1.442695
    %v1257 = vpow.pop %v1256
    %v1258 = vmul.f32 %v1199, 1.442695
    %v1259 = vpow.pop %v1258
    %v1260 = vmul.f32 %v1200, 1.442695
    %v1261 = vpow.pop %v1260
    %v1262 = vmul.f32 %v1201, 1.442695
    %v1263 = vpow.pop %v1262
    %v1264 = vmul.f32 %v1202, 1.442695
    %v1265 = vpow.pop %v1264
    %v1266 = vmul.f32 %v1203, 1.442695
    %v1267 = vpow.pop %v1266
    %1300 = vrot.lane.b32.xlu0 %v1205, 112
    %v1301 = vpop.permute.xlu0 %1300
    %1302 = vrot.lane.b32.xlu0 %v1207, 112
    %v1303 = vpop.permute.xlu0 %1302
    %1304 = vrot.lane.b32.xlu0 %v1209, 112
    %v1305 = vpop.permute.xlu0 %1304
    %1306 = vrot.lane.b32.xlu0 %v1211, 112
    %v1307 = vpop.permute.xlu0 %1306
    %1308 = vrot.lane.b32.xlu0 %v1213, 112
    %v1309 = vpop.permute.xlu0 %1308
    %1310 = vrot.lane.b32.xlu0 %v1215, 112
    %v1311 = vpop.permute.xlu0 %1310
    %1312 = vrot.lane.b32.xlu0 %v1217, 112
    %v1313 = vpop.permute.xlu0 %1312
    %1314 = vrot.lane.b32.xlu0 %v1219, 112
    %v1315 = vpop.permute.xlu0 %1314
    %1316 = vrot.lane.b32.xlu0 %v1221, 112
    %v1317 = vpop.permute.xlu0 %1316
    %1318 = vrot.lane.b32.xlu0 %v1223, 112
    %v1319 = vpop.permute.xlu0 %1318
    %1320 = vrot.lane.b32.xlu0 %v1225, 112
    %v1321 = vpop.permute.xlu0 %1320
    %1322 = vrot.lane.b32.xlu0 %v1227, 112
    %v1323 = vpop.permute.xlu0 %1322
    %1324 = vrot.lane.b32.xlu0 %v1229, 112
    %v1325 = vpop.permute.xlu0 %1324
    %1326 = vrot.lane.b32.xlu0 %v1231, 112
    %v1327 = vpop.permute.xlu0 %1326
    %1328 = vrot.lane.b32.xlu0 %v1233, 112
    %v1329 = vpop.permute.xlu0 %1328
    %1330 = vrot.lane.b32.xlu0 %v1235, 112
    %v1331 = vpop.permute.xlu0 %1330
    %1332 = vrot.lane.b32.xlu0 %v1237, 112
    %v1333 = vpop.permute.xlu0 %1332
    %1334 = vrot.lane.b32.xlu0 %v1239, 112
    %v1335 = vpop.permute.xlu0 %1334
    %1336 = vrot.lane.b32.xlu0 %v1241, 112
    %v1337 = vpop.permute.xlu0 %1336
    %1338 = vrot.lane.b32.xlu0 %v1243, 112
    %v1339 = vpop.permute.xlu0 %1338
    %1340 = vrot.lane.b32.xlu0 %v1245, 112
    %v1341 = vpop.permute.xlu0 %1340
    %1342 = vrot.lane.b32.xlu0 %v1247, 112
    %v1343 = vpop.permute.xlu0 %1342
    %1344 = vrot.lane.b32.xlu0 %v1249, 112
    %v1345 = vpop.permute.xlu0 %1344
    %1346 = vrot.lane.b32.xlu0 %v1251, 112
    %v1347 = vpop.permute.xlu0 %1346
    %1348 = vrot.lane.b32.xlu0 %v1253, 112
    %v1349 = vpop.permute.xlu0 %1348
    %1350 = vrot.lane.b32.xlu0 %v1255, 112
    %v1351 = vpop.permute.xlu0 %1350
    %1352 = vrot.lane.b32.xlu0 %v1257, 112
    %v1353 = vpop.permute.xlu0 %1352
    %1354 = vrot.lane.b32.xlu0 %v1259, 112
    %v1355 = vpop.permute.xlu0 %1354
    %1356 = vrot.lane.b32.xlu0 %v1261, 112
    %v1357 = vpop.permute.xlu0 %1356
    %1358 = vrot.lane.b32.xlu0 %v1263, 112
    %v1359 = vpop.permute.xlu0 %1358
    %1360 = vrot.lane.b32.xlu0 %v1265, 112
    %v1361 = vpop.permute.xlu0 %1360
    %1362 = vrot.lane.b32.xlu0 %v1267, 112
    %v1363 = vpop.permute.xlu0 %1362
    %v1396 = vmul.f32 %v1140, %v1301
    %v1397 = vmul.f32 %v1141, %v1303
    %v1398 = vmul.f32 %v1142, %v1305
    %v1399 = vmul.f32 %v1143, %v1307
    %v1400 = vmul.f32 %v1144, %v1309
    %v1401 = vmul.f32 %v1145, %v1311
    %v1402 = vmul.f32 %v1146, %v1313
    %v1403 = vmul.f32 %v1147, %v1315
    %v1404 = vmul.f32 %v1148, %v1317
    %v1405 = vmul.f32 %v1149, %v1319
    %v1406 = vmul.f32 %v1150, %v1321
    %v1407 = vmul.f32 %v1151, %v1323
    %v1408 = vmul.f32 %v1152, %v1325
    %v1409 = vmul.f32 %v1153, %v1327
    %v1410 = vmul.f32 %v1154, %v1329
    %v1411 = vmul.f32 %v1155, %v1331
    %v1412 = vmul.f32 %v1156, %v1333
    %v1413 = vmul.f32 %v1157, %v1335
    %v1414 = vmul.f32 %v1158, %v1337
    %v1415 = vmul.f32 %v1159, %v1339
    %v1416 = vmul.f32 %v1160, %v1341
    %v1417 = vmul.f32 %v1161, %v1343
    %v1418 = vmul.f32 %v1162, %v1345
    %v1419 = vmul.f32 %v1163, %v1347
    %v1420 = vmul.f32 %v1164, %v1349
    %v1421 = vmul.f32 %v1165, %v1351
    %v1422 = vmul.f32 %v1166, %v1353
    %v1423 = vmul.f32 %v1167, %v1355
    %v1424 = vmul.f32 %v1168, %v1357
    %v1425 = vmul.f32 %v1169, %v1359
    %v1426 = vmul.f32 %v1170, %v1361
    %v1427 = vmul.f32 %v1171, %v1363
    %v1428 = vadd.f32 %v1014, %v1396
    %v1429 = vadd.f32 %v1017, %v1397
    %v1430 = vadd.f32 %v1022, %v1398
    %v1431 = vadd.f32 %v1025, %v1399
    %v1432 = vadd.f32 %v1030, %v1400
    %v1433 = vadd.f32 %v1033, %v1401
    %v1434 = vadd.f32 %v1038, %v1402
    %v1435 = vadd.f32 %v1041, %v1403
    %v1436 = vadd.f32 %v1046, %v1404
    %v1437 = vadd.f32 %v1049, %v1405
    %v1438 = vadd.f32 %v1054, %v1406
    %v1439 = vadd.f32 %v1057, %v1407
    %v1440 = vadd.f32 %v1062, %v1408
    %v1441 = vadd.f32 %v1065, %v1409
    %v1442 = vadd.f32 %v1070, %v1410
    %v1443 = vadd.f32 %v1073, %v1411
    %v1444 = vadd.f32 %v1078, %v1412
    %v1445 = vadd.f32 %v1081, %v1413
    %v1446 = vadd.f32 %v1086, %v1414
    %v1447 = vadd.f32 %v1089, %v1415
    %v1448 = vadd.f32 %v1094, %v1416
    %v1449 = vadd.f32 %v1097, %v1417
    %v1450 = vadd.f32 %v1102, %v1418
    %v1451 = vadd.f32 %v1105, %v1419
    %v1452 = vadd.f32 %v1110, %v1420
    %v1453 = vadd.f32 %v1113, %v1421
    %v1454 = vadd.f32 %v1118, %v1422
    %v1455 = vadd.f32 %v1121, %v1423
    %v1456 = vadd.f32 %v1126, %v1424
    %v1457 = vadd.f32 %v1129, %v1425
    %v1458 = vadd.f32 %v1134, %v1426
    %v1459 = vadd.f32 %v1137, %v1427
    %v1460 = vpack.c.bf16 %v1429, %v1428
    %v1461 = vpack.c.bf16 %v1431, %v1430
    %v1462 = vpack.c.bf16 %v1433, %v1432
    %v1463 = vpack.c.bf16 %v1435, %v1434
    %v1464 = vpack.c.bf16 %v1437, %v1436
    %v1465 = vpack.c.bf16 %v1439, %v1438
    %v1466 = vpack.c.bf16 %v1441, %v1440
    %v1467 = vpack.c.bf16 %v1443, %v1442
    %v1468 = vpack.c.bf16 %v1445, %v1444
    %v1469 = vpack.c.bf16 %v1447, %v1446
    %v1470 = vpack.c.bf16 %v1449, %v1448
    %v1471 = vpack.c.bf16 %v1451, %v1450
    %v1472 = vpack.c.bf16 %v1453, %v1452
    %v1473 = vpack.c.bf16 %v1455, %v1454
    %v1474 = vpack.c.bf16 %v1457, %v1456
    %v1475 = vpack.c.bf16 %v1459, %v1458
    %v1476 = vld [vmem:[%s8] sm:$0xf]
    %v1477 = vld [vmem:[%s8 + $0x4] sm:$0xf]
    %v1478 = vld [vmem:[%s9] sm:$0x1]
    %v1480 = vlaneseq
    %v1481 = vshrl.u32 %v1480, 7
    %v1482 = vsub.s32 0, %v1481
    %v1483 = vrot.slane %v1478, %v1482
    %v1487 = vunpack.c.l.b16 %v1476
    %v1488 = vunpack.c.l.b16 %v1477
    %v1489 = vpack.c.b16 %v1488, %v1487
    %vm1491 = vcmask 130048
    %v1493 = vsel %vm1491, %v1460, 0
    %v1496 = vsel %vm1491, %v1461, 0
    %v1499 = vsel %vm1491, %v1462, 0
    %v1502 = vsel %vm1491, %v1463, 0
    %v1505 = vsel %vm1491, %v1464, 0
    %v1508 = vsel %vm1491, %v1465, 0
    %v1511 = vsel %vm1491, %v1466, 0
    %v1514 = vsel %vm1491, %v1467, 0
    %v1517 = vsel %vm1491, %v1468, 0
    %v1520 = vsel %vm1491, %v1469, 0
    %v1523 = vsel %vm1491, %v1470, 0
    %v1526 = vsel %vm1491, %v1471, 0
    %v1529 = vsel %vm1491, %v1472, 0
    %v1532 = vsel %vm1491, %v1473, 0
    %v1535 = vsel %vm1491, %v1474, 0
    %v1538 = vsel %vm1491, %v1475, 0
    %1540 = vmatprep.subr.bf16.mxu0 0
    %1541 = vmatpush1.bf16.msra.mxu0 %v1489
    %1542 = vmatprep.subr.bf16.mxu0 0
    %1543 = vmatpush1.bf16.msra.mxu0 0
    %1544 = vmatprep.subr.bf16.mxu0 0
    %1545 = vmatpush1.bf16.msra.mxu0 0
    %1546 = vmatprep.subr.bf16.mxu0 0
    %1547 = vmatpush1.bf16.msra.mxu0 0
    %1548 = vmatprep.subr.bf16.mxu0 0
    %1549 = vmatpush1.bf16.msra.mxu0 0
    %1550 = vmatprep.subr.bf16.mxu0 0
    %1551 = vmatpush1.bf16.msra.mxu0 0
    %1552 = vmatprep.subr.bf16.mxu0 0
    %1553 = vmatpush1.bf16.msra.mxu0 0
    %1554 = vmatprep.subr.bf16.mxu0 0
    %1555 = vmatpush1.bf16.msra.mxu0 0
    %1556 = vmatprep.subr.bf16.mxu0 0
    %1557 = vmatpush1.bf16.msra.mxu0 0
    %1558 = vmatprep.subr.bf16.mxu0 0
    %1559 = vmatpush1.bf16.msra.mxu0 0
    %1560 = vmatprep.subr.bf16.mxu0 0
    %1561 = vmatpush1.bf16.msra.mxu0 0
    %1562 = vmatprep.subr.bf16.mxu0 0
    %1563 = vmatpush1.bf16.msra.mxu0 0
    %1564 = vmatprep.subr.bf16.mxu0 0
    %1565 = vmatpush1.bf16.msra.mxu0 0
    %1566 = vmatprep.subr.bf16.mxu0 0
    %1567 = vmatpush1.bf16.msra.mxu0 0
    %1568 = vmatprep.subr.bf16.mxu0 0
    %1569 = vmatpush1.bf16.msra.mxu0 0
    %1570 = vmatprep.subr.bf16.mxu0 0
    %1571 = vmatpush1.bf16.msra.mxu0 0
    %1572 = vmatprep.mubr.bf16.mxu0 0
    %1573 = vmatmul.mubr.bf16.gmra.mrb[0].mxu0 %v1493
    %v1574 = vpop.f32.mrb[0].mxu0
    %v1575 = vadd.f32 %v1483, %v1574
    %v1576 = vpop.f32.mrb[0].mxu0
    %v1577 = vpop.f32.mrb[0].mxu0
    %v1578 = vadd.f32 %v1483, %v1577
    %v1579 = vpop.f32.mrb[0].mxu0
    %1580 = vmatprep.mubr.bf16.mxu0 0
    %1581 = vmatmul.mubr.bf16.gmra.mrb[0].mxu0 %v1496
    %v1582 = vpop.f32.mrb[0].mxu0
    %v1583 = vadd.f32 %v1483, %v1582
    %v1584 = vpop.f32.mrb[0].mxu0
    %v1585 = vpop.f32.mrb[0].mxu0
    %v1586 = vadd.f32 %v1483, %v1585
    %v1587 = vpop.f32.mrb[0].mxu0
    %1588 = vmatprep.mubr.bf16.mxu0 0
    %1589 = vmatmul.mubr.bf16.gmra.mrb[0].mxu0 %v1499
    %v1590 = vpop.f32.mrb[0].mxu0
    %v1591 = vadd.f32 %v1483, %v1590
    %v1592 = vpop.f32.mrb[0].mxu0
    %v1593 = vpop.f32.mrb[0].mxu0
    %v1594 = vadd.f32 %v1483, %v1593
    %v1595 = vpop.f32.mrb[0].mxu0
    %1596 = vmatprep.mubr.bf16.mxu0 0
    %1597 = vmatmul.mubr.bf16.gmra.mrb[0].mxu0 %v1502
    %v1598 = vpop.f32.mrb[0].mxu0
    %v1599 = vadd.f32 %v1483, %v1598
    %v1600 = vpop.f32.mrb[0].mxu0
    %v1601 = vpop.f32.mrb[0].mxu0
    %v1602 = vadd.f32 %v1483, %v1601
    %v1603 = vpop.f32.mrb[0].mxu0
    %1604 = vmatprep.mubr.bf16.mxu0 0
    %1605 = vmatmul.mubr.bf16.gmra.mrb[0].mxu0 %v1505
    %v1606 = vpop.f32.mrb[0].mxu0
    %v1607 = vadd.f32 %v1483, %v1606
    %v1608 = vpop.f32.mrb[0].mxu0
    %v1609 = vpop.f32.mrb[0].mxu0
    %v1610 = vadd.f32 %v1483, %v1609
    %v1611 = vpop.f32.mrb[0].mxu0
    %1612 = vmatprep.mubr.bf16.mxu0 0
    %1613 = vmatmul.mubr.bf16.gmra.mrb[0].mxu0 %v1508
    %v1614 = vpop.f32.mrb[0].mxu0
    %v1615 = vadd.f32 %v1483, %v1614
    %v1616 = vpop.f32.mrb[0].mxu0
    %v1617 = vpop.f32.mrb[0].mxu0
    %v1618 = vadd.f32 %v1483, %v1617
    %v1619 = vpop.f32.mrb[0].mxu0
    %1620 = vmatprep.mubr.bf16.mxu0 0
    %1621 = vmatmul.mubr.bf16.gmra.mrb[0].mxu0 %v1511
    %v1622 = vpop.f32.mrb[0].mxu0
    %v1623 = vadd.f32 %v1483, %v1622
    %v1624 = vpop.f32.mrb[0].mxu0
    %v1625 = vpop.f32.mrb[0].mxu0
    %v1626 = vadd.f32 %v1483, %v1625
    %v1627 = vpop.f32.mrb[0].mxu0
    %1628 = vmatprep.mubr.bf16.mxu0 0
    %1629 = vmatmul.mubr.bf16.gmra.mrb[0].mxu0 %v1514
    %v1630 = vpop.f32.mrb[0].mxu0
    %v1631 = vadd.f32 %v1483, %v1630
    %v1632 = vpop.f32.mrb[0].mxu0
    %v1633 = vpop.f32.mrb[0].mxu0
    %v1634 = vadd.f32 %v1483, %v1633
    %v1635 = vpop.f32.mrb[0].mxu0
    %1636 = vmatprep.mubr.bf16.mxu0 0
    %1637 = vmatmul.mubr.bf16.gmra.mrb[0].mxu0 %v1517
    %v1638 = vpop.f32.mrb[0].mxu0
    %v1639 = vadd.f32 %v1483, %v1638
    %v1640 = vpop.f32.mrb[0].mxu0
    %v1641 = vpop.f32.mrb[0].mxu0
    %v1642 = vadd.f32 %v1483, %v1641
    %v1643 = vpop.f32.mrb[0].mxu0
    %1644 = vmatprep.mubr.bf16.mxu0 0
    %1645 = vmatmul.mubr.bf16.gmra.mrb[0].mxu0 %v1520
    %v1646 = vpop.f32.mrb[0].mxu0
    %v1647 = vadd.f32 %v1483, %v1646
    %v1648 = vpop.f32.mrb[0].mxu0
    %v1649 = vpop.f32.mrb[0].mxu0
    %v1650 = vadd.f32 %v1483, %v1649
    %v1651 = vpop.f32.mrb[0].mxu0
    %1652 = vmatprep.mubr.bf16.mxu0 0
    %1653 = vmatmul.mubr.bf16.gmra.mrb[0].mxu0 %v1523
    %v1654 = vpop.f32.mrb[0].mxu0
    %v1655 = vadd.f32 %v1483, %v1654
    %v1656 = vpop.f32.mrb[0].mxu0
    %v1657 = vpop.f32.mrb[0].mxu0
    %v1658 = vadd.f32 %v1483, %v1657
    %v1659 = vpop.f32.mrb[0].mxu0
    %1660 = vmatprep.mubr.bf16.mxu0 0
    %1661 = vmatmul.mubr.bf16.gmra.mrb[0].mxu0 %v1526
    %v1662 = vpop.f32.mrb[0].mxu0
    %v1663 = vadd.f32 %v1483, %v1662
    %v1664 = vpop.f32.mrb[0].mxu0
    %v1665 = vpop.f32.mrb[0].mxu0
    %v1666 = vadd.f32 %v1483, %v1665
    %v1667 = vpop.f32.mrb[0].mxu0
    %1668 = vmatprep.mubr.bf16.mxu0 0
    %1669 = vmatmul.mubr.bf16.gmra.mrb[0].mxu0 %v1529
    %v1670 = vpop.f32.mrb[0].mxu0
    %v1671 = vadd.f32 %v1483, %v1670
    %v1672 = vpop.f32.mrb[0].mxu0
    %v1673 = vpop.f32.mrb[0].mxu0
    %v1674 = vadd.f32 %v1483, %v1673
    %v1675 = vpop.f32.mrb[0].mxu0
    %1676 = vmatprep.mubr.bf16.mxu0 0
    %1677 = vmatmul.mubr.bf16.gmra.mrb[0].mxu0 %v1532
    %v1678 = vpop.f32.mrb[0].mxu0
    %v1679 = vadd.f32 %v1483, %v1678
    %v1680 = vpop.f32.mrb[0].mxu0
    %v1681 = vpop.f32.mrb[0].mxu0
    %v1682 = vadd.f32 %v1483, %v1681
    %v1683 = vpop.f32.mrb[0].mxu0
    %1684 = vmatprep.mubr.bf16.mxu0 0
    %1685 = vmatmul.mubr.bf16.gmra.mrb[0].mxu0 %v1535
    %v1686 = vpop.f32.mrb[0].mxu0
    %v1687 = vadd.f32 %v1483, %v1686
    %v1688 = vpop.f32.mrb[0].mxu0
    %v1689 = vpop.f32.mrb[0].mxu0
    %v1690 = vadd.f32 %v1483, %v1689
    %v1691 = vpop.f32.mrb[0].mxu0
    %1692 = vmatprep.mubr.bf16.mxu0 0
    %1693 = vmatmul.mubr.bf16.gmra.mrb[0].mxu0 %v1538
    %v1694 = vpop.f32.mrb[0].mxu0
    %v1695 = vadd.f32 %v1483, %v1694
    %v1696 = vpop.f32.mrb[0].mxu0
    %v1697 = vpop.f32.mrb[0].mxu0
    %v1698 = vadd.f32 %v1483, %v1697
    %v1699 = vpop.f32.mrb[0].mxu0
    %1700 = vdwg.mxu0
    %v1701 = vmax.f32 %v1575, 0.0
    %v1702 = vmax.f32 %v1578, 0.0
    %v1703 = vmax.f32 %v1583, 0.0
    %v1704 = vmax.f32 %v1586, 0.0
    %v1705 = vmax.f32 %v1591, 0.0
    %v1706 = vmax.f32 %v1594, 0.0
    %v1707 = vmax.f32 %v1599, 0.0
    %v1708 = vmax.f32 %v1602, 0.0
    %v1709 = vmax.f32 %v1607, 0.0
    %v1710 = vmax.f32 %v1610, 0.0
    %v1711 = vmax.f32 %v1615, 0.0
    %v1712 = vmax.f32 %v1618, 0.0
    %v1713 = vmax.f32 %v1623, 0.0
    %v1714 = vmax.f32 %v1626, 0.0
    %v1715 = vmax.f32 %v1631, 0.0
    %v1716 = vmax.f32 %v1634, 0.0
    %v1717 = vmax.f32 %v1639, 0.0
    %v1718 = vmax.f32 %v1642, 0.0
    %v1719 = vmax.f32 %v1647, 0.0
    %v1720 = vmax.f32 %v1650, 0.0
    %v1721 = vmax.f32 %v1655, 0.0
    %v1722 = vmax.f32 %v1658, 0.0
    %v1723 = vmax.f32 %v1663, 0.0
    %v1724 = vmax.f32 %v1666, 0.0
    %v1725 = vmax.f32 %v1671, 0.0
    %v1726 = vmax.f32 %v1674, 0.0
    %v1727 = vmax.f32 %v1679, 0.0
    %v1728 = vmax.f32 %v1682, 0.0
    %v1729 = vmax.f32 %v1687, 0.0
    %v1730 = vmax.f32 %v1690, 0.0
    %v1731 = vmax.f32 %v1695, 0.0
    %v1732 = vmax.f32 %v1698, 0.0
    %v1733 = vpack.c.bf16 %v1702, %v1701
    %v1734 = vpack.c.bf16 %v1704, %v1703
    %v1735 = vpack.c.bf16 %v1706, %v1705
    %v1736 = vpack.c.bf16 %v1708, %v1707
    %v1737 = vpack.c.bf16 %v1710, %v1709
    %v1738 = vpack.c.bf16 %v1712, %v1711
    %v1739 = vpack.c.bf16 %v1714, %v1713
    %v1740 = vpack.c.bf16 %v1716, %v1715
    %v1741 = vpack.c.bf16 %v1718, %v1717
    %v1742 = vpack.c.bf16 %v1720, %v1719
    %v1743 = vpack.c.bf16 %v1722, %v1721
    %v1744 = vpack.c.bf16 %v1724, %v1723
    %v1745 = vpack.c.bf16 %v1726, %v1725
    %v1746 = vpack.c.bf16 %v1728, %v1727
    %v1747 = vpack.c.bf16 %v1730, %v1729
    %v1748 = vpack.c.bf16 %v1732, %v1731
    %v1749 = vld [vmem:[#allocation7] sm:$0xf]
    %v1750 = vld [vmem:[#allocation7 + $0x4] sm:$0xf]
    %v1751 = vld [vmem:[#allocation7 + $0x8] sm:$0xf]
    %v1752 = vld [vmem:[#allocation7 + $0xc] sm:$0xf]
    %v1753 = vld [vmem:[#allocation7 + $0x10] sm:$0xf]
    %v1754 = vld [vmem:[#allocation7 + $0x14] sm:$0xf]
    %v1755 = vld [vmem:[#allocation7 + $0x18] sm:$0xf]
    %v1756 = vld [vmem:[#allocation7 + $0x1c] sm:$0xf]
    %v1757 = vld [vmem:[#allocation7 + $0x20] sm:$0xf]
    %v1758 = vld [vmem:[#allocation7 + $0x24] sm:$0xf]
    %v1759 = vld [vmem:[#allocation7 + $0x28] sm:$0xf]
    %v1760 = vld [vmem:[#allocation7 + $0x2c] sm:$0xf]
    %v1761 = vld [vmem:[#allocation7 + $0x30] sm:$0xf]
    %v1762 = vld [vmem:[#allocation7 + $0x34] sm:$0xf]
    %v1763 = vld [vmem:[#allocation7 + $0x38] sm:$0xf]
    %v1764 = vld [vmem:[#allocation7 + $0x3c] sm:$0xf]
    %v1765 = vld [vmem:[%s11] sm:$0x1]
    %v1767 = vlaneseq
    %v1768 = vshrl.u32 %v1767, 7
    %v1769 = vsub.s32 0, %v1768
    %v1770 = vrot.slane %v1765, %v1769
    %v1788 = vunpack.c.l.b16 %v1749
    %v1789 = vunpack.c.l.b16 %v1750
    %v1790 = vunpack.c.l.b16 %v1751
    %v1791 = vunpack.c.l.b16 %v1752
    %v1792 = vunpack.c.l.b16 %v1753
    %v1793 = vunpack.c.l.b16 %v1754
    %v1794 = vunpack.c.l.b16 %v1755
    %v1795 = vunpack.c.l.b16 %v1756
    %v1796 = vunpack.c.l.b16 %v1757
    %v1797 = vunpack.c.l.b16 %v1758
    %v1798 = vunpack.c.l.b16 %v1759
    %v1799 = vunpack.c.l.b16 %v1760
    %v1800 = vunpack.c.l.b16 %v1761
    %v1801 = vunpack.c.l.b16 %v1762
    %v1802 = vunpack.c.l.b16 %v1763
    %v1803 = vunpack.c.l.b16 %v1764
    %v1804 = vpack.c.b16 %v1789, %v1788
    %v1805 = vpack.c.b16 %v1791, %v1790
    %v1806 = vpack.c.b16 %v1793, %v1792
    %v1807 = vpack.c.b16 %v1795, %v1794
    %v1808 = vpack.c.b16 %v1797, %v1796
    %v1809 = vpack.c.b16 %v1799, %v1798
    %v1810 = vpack.c.b16 %v1801, %v1800
    %v1811 = vpack.c.b16 %v1803, %v1802
    %1820 = vmatprep.subr.bf16.mxu0 0
    %1821 = vmatpush1.bf16.msra.mxu0 %v1804
    %1822 = vmatprep.subr.bf16.mxu0 0
    %1823 = vmatpush1.bf16.msra.mxu0 %v1805
    %1824 = vmatprep.subr.bf16.mxu0 0
    %1825 = vmatpush1.bf16.msra.mxu0 %v1806
    %1826 = vmatprep.subr.bf16.mxu0 0
    %1827 = vmatpush1.bf16.msra.mxu0 %v1807
    %1828 = vmatprep.subr.bf16.mxu0 0
    %1829 = vmatpush1.bf16.msra.mxu0 %v1808
    %1830 = vmatprep.subr.bf16.mxu0 0
    %1831 = vmatpush1.bf16.msra.mxu0 %v1809
    %1832 = vmatprep.subr.bf16.mxu0 0
    %1833 = vmatpush1.bf16.msra.mxu0 %v1810
    %1834 = vmatprep.subr.bf16.mxu0 0
    %1835 = vmatpush1.bf16.msra.mxu0 %v1811
    %1836 = vmatprep.subr.bf16.mxu0 0
    %1837 = vmatpush1.bf16.msra.mxu0 0
    %1838 = vmatprep.subr.bf16.mxu0 0
    %1839 = vmatpush1.bf16.msra.mxu0 0
    %1840 = vmatprep.subr.bf16.mxu0 0
    %1841 = vmatpush1.bf16.msra.mxu0 0
    %1842 = vmatprep.subr.bf16.mxu0 0
    %1843 = vmatpush1.bf16.msra.mxu0 0
    %1844 = vmatprep.subr.bf16.mxu0 0
    %1845 = vmatpush1.bf16.msra.mxu0 0
    %1846 = vmatprep.subr.bf16.mxu0 0
    %1847 = vmatpush1.bf16.msra.mxu0 0
    %1848 = vmatprep.subr.bf16.mxu0 0
    %1849 = vmatpush1.bf16.msra.mxu0 0
    %1850 = vmatprep.subr.bf16.mxu0 0
    %1851 = vmatpush1.bf16.msra.mxu0 0
    %1852 = vmatprep.mubr.bf16.mxu0 0
    %1853 = vmatmul.mubr.bf16.gmra.mrb[0].mxu0 %v1733
    %v1854 = vpop.f32.mrb[0].mxu0
    %v1855 = vadd.f32 %v1770, %v1854
    %v1856 = vpop.f32.mrb[0].mxu0
    %v1857 = vpop.f32.mrb[0].mxu0
    %v1858 = vadd.f32 %v1770, %v1857
    %v1859 = vpop.f32.mrb[0].mxu0
    %1860 = vmatprep.mubr.bf16.mxu0 0
    %1861 = vmatmul.mubr.bf16.gmra.mrb[0].mxu0 %v1734
    %v1862 = vpop.f32.mrb[0].mxu0
    %v1863 = vadd.f32 %v1770, %v1862
    %v1864 = vpop.f32.mrb[0].mxu0
    %v1865 = vpop.f32.mrb[0].mxu0
    %v1866 = vadd.f32 %v1770, %v1865
    %v1867 = vpop.f32.mrb[0].mxu0
    %1868 = vmatprep.mubr.bf16.mxu0 0
    %1869 = vmatmul.mubr.bf16.gmra.mrb[0].mxu0 %v1735
    %v1870 = vpop.f32.mrb[0].mxu0
    %v1871 = vadd.f32 %v1770, %v1870
    %v1872 = vpop.f32.mrb[0].mxu0
    %v1873 = vpop.f32.mrb[0].mxu0
    %v1874 = vadd.f32 %v1770, %v1873
    %v1875 = vpop.f32.mrb[0].mxu0
    %1876 = vmatprep.mubr.bf16.mxu0 0
    %1877 = vmatmul.mubr.bf16.gmra.mrb[0].mxu0 %v1736
    %v1878 = vpop.f32.mrb[0].mxu0
    %v1879 = vadd.f32 %v1770, %v1878
    %v1880 = vpop.f32.mrb[0].mxu0
    %v1881 = vpop.f32.mrb[0].mxu0
    %v1882 = vadd.f32 %v1770, %v1881
    %v1883 = vpop.f32.mrb[0].mxu0
    %1884 = vmatprep.mubr.bf16.mxu0 0
    %1885 = vmatmul.mubr.bf16.gmra.mrb[0].mxu0 %v1737
    %v1886 = vpop.f32.mrb[0].mxu0
    %v1887 = vadd.f32 %v1770, %v1886
    %v1888 = vpop.f32.mrb[0].mxu0
    %v1889 = vpop.f32.mrb[0].mxu0
    %v1890 = vadd.f32 %v1770, %v1889
    %v1891 = vpop.f32.mrb[0].mxu0
    %1892 = vmatprep.mubr.bf16.mxu0 0
    %1893 = vmatmul.mubr.bf16.gmra.mrb[0].mxu0 %v1738
    %v1894 = vpop.f32.mrb[0].mxu0
    %v1895 = vadd.f32 %v1770, %v1894
    %v1896 = vpop.f32.mrb[0].mxu0
    %v1897 = vpop.f32.mrb[0].mxu0
    %v1898 = vadd.f32 %v1770, %v1897
    %v1899 = vpop.f32.mrb[0].mxu0
    %1900 = vmatprep.mubr.bf16.mxu0 0
    %1901 = vmatmul.mubr.bf16.gmra.mrb[0].mxu0 %v1739
    %v1902 = vpop.f32.mrb[0].mxu0
    %v1903 = vadd.f32 %v1770, %v1902
    %v1904 = vpop.f32.mrb[0].mxu0
    %v1905 = vpop.f32.mrb[0].mxu0
    %v1906 = vadd.f32 %v1770, %v1905
    %v1907 = vpop.f32.mrb[0].mxu0
    %1908 = vmatprep.mubr.bf16.mxu0 0
    %1909 = vmatmul.mubr.bf16.gmra.mrb[0].mxu0 %v1740
    %v1910 = vpop.f32.mrb[0].mxu0
    %v1911 = vadd.f32 %v1770, %v1910
    %v1912 = vpop.f32.mrb[0].mxu0
    %v1913 = vpop.f32.mrb[0].mxu0
    %v1914 = vadd.f32 %v1770, %v1913
    %v1915 = vpop.f32.mrb[0].mxu0
    %1916 = vmatprep.mubr.bf16.mxu0 0
    %1917 = vmatmul.mubr.bf16.gmra.mrb[0].mxu0 %v1741
    %v1918 = vpop.f32.mrb[0].mxu0
    %v1919 = vadd.f32 %v1770, %v1918
    %v1920 = vpop.f32.mrb[0].mxu0
    %v1921 = vpop.f32.mrb[0].mxu0
    %v1922 = vadd.f32 %v1770, %v1921
    %v1923 = vpop.f32.mrb[0].mxu0
    %1924 = vmatprep.mubr.bf16.mxu0 0
    %1925 = vmatmul.mubr.bf16.gmra.mrb[0].mxu0 %v1742
    %v1926 = vpop.f32.mrb[0].mxu0
    %v1927 = vadd.f32 %v1770, %v1926
    %v1928 = vpop.f32.mrb[0].mxu0
    %v1929 = vpop.f32.mrb[0].mxu0
    %v1930 = vadd.f32 %v1770, %v1929
    %v1931 = vpop.f32.mrb[0].mxu0
    %1932 = vmatprep.mubr.bf16.mxu0 0
    %1933 = vmatmul.mubr.bf16.gmra.mrb[0].mxu0 %v1743
    %v1934 = vpop.f32.mrb[0].mxu0
    %v1935 = vadd.f32 %v1770, %v1934
    %v1936 = vpop.f32.mrb[0].mxu0
    %v1937 = vpop.f32.mrb[0].mxu0
    %v1938 = vadd.f32 %v1770, %v1937
    %v1939 = vpop.f32.mrb[0].mxu0
    %1940 = vmatprep.mubr.bf16.mxu0 0
    %1941 = vmatmul.mubr.bf16.gmra.mrb[0].mxu0 %v1744
    %v1942 = vpop.f32.mrb[0].mxu0
    %v1943 = vadd.f32 %v1770, %v1942
    %v1944 = vpop.f32.mrb[0].mxu0
    %v1945 = vpop.f32.mrb[0].mxu0
    %v1946 = vadd.f32 %v1770, %v1945
    %v1947 = vpop.f32.mrb[0].mxu0
    %1948 = vmatprep.mubr.bf16.mxu0 0
    %1949 = vmatmul.mubr.bf16.gmra.mrb[0].mxu0 %v1745
    %v1950 = vpop.f32.mrb[0].mxu0
    %v1951 = vadd.f32 %v1770, %v1950
    %v1952 = vpop.f32.mrb[0].mxu0
    %v1953 = vpop.f32.mrb[0].mxu0
    %v1954 = vadd.f32 %v1770, %v1953
    %v1955 = vpop.f32.mrb[0].mxu0
    %1956 = vmatprep.mubr.bf16.mxu0 0
    %1957 = vmatmul.mubr.bf16.gmra.mrb[0].mxu0 %v1746
    %v1958 = vpop.f32.mrb[0].mxu0
    %v1959 = vadd.f32 %v1770, %v1958
    %v1960 = vpop.f32.mrb[0].mxu0
    %v1961 = vpop.f32.mrb[0].mxu0
    %v1962 = vadd.f32 %v1770, %v1961
    %v1963 = vpop.f32.mrb[0].mxu0
    %1964 = vmatprep.mubr.bf16.mxu0 0
    %1965 = vmatmul.mubr.bf16.gmra.mrb[0].mxu0 %v1747
    %v1966 = vpop.f32.mrb[0].mxu0
    %v1967 = vadd.f32 %v1770, %v1966
    %v1968 = vpop.f32.mrb[0].mxu0
    %v1969 = vpop.f32.mrb[0].mxu0
    %v1970 = vadd.f32 %v1770, %v1969
    %v1971 = vpop.f32.mrb[0].mxu0
    %1972 = vmatprep.mubr.bf16.mxu0 0
    %1973 = vmatmul.mubr.bf16.gmra.mrb[0].mxu0 %v1748
    %v1974 = vpop.f32.mrb[0].mxu0
    %v1975 = vadd.f32 %v1770, %v1974
    %v1976 = vpop.f32.mrb[0].mxu0
    %v1977 = vpop.f32.mrb[0].mxu0
    %v1978 = vadd.f32 %v1770, %v1977
    %v1979 = vpop.f32.mrb[0].mxu0
    %1980 = vdwg.mxu0
    %v1981 = vmax.f32 %v1855, 0.0
    %v1982 = vmax.f32 %v1858, 0.0
    %v1983 = vmax.f32 %v1863, 0.0
    %v1984 = vmax.f32 %v1866, 0.0
    %v1985 = vmax.f32 %v1871, 0.0
    %v1986 = vmax.f32 %v1874, 0.0
    %v1987 = vmax.f32 %v1879, 0.0
    %v1988 = vmax.f32 %v1882, 0.0
    %v1989 = vmax.f32 %v1887, 0.0
    %v1990 = vmax.f32 %v1890, 0.0
    %v1991 = vmax.f32 %v1895, 0.0
    %v1992 = vmax.f32 %v1898, 0.0
    %v1993 = vmax.f32 %v1903, 0.0
    %v1994 = vmax.f32 %v1906, 0.0
    %v1995 = vmax.f32 %v1911, 0.0
    %v1996 = vmax.f32 %v1914, 0.0
    %v1997 = vmax.f32 %v1919, 0.0
    %v1998 = vmax.f32 %v1922, 0.0
    %v1999 = vmax.f32 %v1927, 0.0
    %v2000 = vmax.f32 %v1930, 0.0
    %v2001 = vmax.f32 %v1935, 0.0
    %v2002 = vmax.f32 %v1938, 0.0
    %v2003 = vmax.f32 %v1943, 0.0
    %v2004 = vmax.f32 %v1946, 0.0
    %v2005 = vmax.f32 %v1951, 0.0
    %v2006 = vmax.f32 %v1954, 0.0
    %v2007 = vmax.f32 %v1959, 0.0
    %v2008 = vmax.f32 %v1962, 0.0
    %v2009 = vmax.f32 %v1967, 0.0
    %v2010 = vmax.f32 %v1970, 0.0
    %v2011 = vmax.f32 %v1975, 0.0
    %v2012 = vmax.f32 %v1978, 0.0
    %v2013 = vpack.c.bf16 %v1982, %v1981
    %v2014 = vpack.c.bf16 %v1984, %v1983
    %v2015 = vpack.c.bf16 %v1986, %v1985
    %v2016 = vpack.c.bf16 %v1988, %v1987
    %v2017 = vpack.c.bf16 %v1990, %v1989
    %v2018 = vpack.c.bf16 %v1992, %v1991
    %v2019 = vpack.c.bf16 %v1994, %v1993
    %v2020 = vpack.c.bf16 %v1996, %v1995
    %v2021 = vpack.c.bf16 %v1998, %v1997
    %v2022 = vpack.c.bf16 %v2000, %v1999
    %v2023 = vpack.c.bf16 %v2002, %v2001
    %v2024 = vpack.c.bf16 %v2004, %v2003
    %v2025 = vpack.c.bf16 %v2006, %v2005
    %v2026 = vpack.c.bf16 %v2008, %v2007
    %v2027 = vpack.c.bf16 %v2010, %v2009
    %v2028 = vpack.c.bf16 %v2012, %v2011
    %v2029 = vld [vmem:[%s12] sm:$0xff]
    %v2030 = vld [vmem:[%s12 + $0x8] sm:$0xff]
    %v2031 = vld [vmem:[%s12 + $0x10] sm:$0xff]
    %v2032 = vld [vmem:[%s12 + $0x18] sm:$0xff]
    %v2033 = vld [vmem:[%s12 + $0x20] sm:$0xff]
    %v2034 = vld [vmem:[%s12 + $0x28] sm:$0xff]
    %v2035 = vld [vmem:[%s12 + $0x30] sm:$0xff]
    %v2036 = vld [vmem:[%s12 + $0x38] sm:$0xff]
    %v2037 = vld [vmem:[%s12 + $0x40] sm:$0xff]
    %v2038 = vld [vmem:[%s12 + $0x48] sm:$0xff]
    %v2039 = vld [vmem:[%s12 + $0x50] sm:$0xff]
    %v2040 = vld [vmem:[%s12 + $0x58] sm:$0xff]
    %v2041 = vld [vmem:[%s12 + $0x60] sm:$0xff]
    %v2042 = vld [vmem:[%s12 + $0x68] sm:$0xff]
    %v2043 = vld [vmem:[%s12 + $0x70] sm:$0xff]
    %v2044 = vld [vmem:[%s12 + $0x78] sm:$0xff]
    %v2045 = vld [vmem:[%s13] sm:$0x3]
    %v2047 = vlaneseq
    %v2048 = vshrl.u32 %v2047, 7
    %v2049 = vsub.s32 0, %v2048
    %v2050 = vrot.slane %v2045, %v2049
    %v2051 = vlaneseq
    %v2052 = vshrl.u32 %v2051, 7
    %v2053 = vsub.s32 1, %v2052
    %v2054 = vrot.slane %v2045, %v2053
    %v2073 = vunpack.c.l.b16 %v2029
    %v2074 = vunpack.c.h.b16 %v2029
    %v2075 = vunpack.c.l.b16 %v2030
    %v2076 = vunpack.c.h.b16 %v2030
    %v2077 = vunpack.c.l.b16 %v2031
    %v2078 = vunpack.c.h.b16 %v2031
    %v2079 = vunpack.c.l.b16 %v2032
    %v2080 = vunpack.c.h.b16 %v2032
    %v2081 = vunpack.c.l.b16 %v2033
    %v2082 = vunpack.c.h.b16 %v2033
    %v2083 = vunpack.c.l.b16 %v2034
    %v2084 = vunpack.c.h.b16 %v2034
    %v2085 = vunpack.c.l.b16 %v2035
    %v2086 = vunpack.c.h.b16 %v2035
    %v2087 = vunpack.c.l.b16 %v2036
    %v2088 = vunpack.c.h.b16 %v2036
    %v2089 = vunpack.c.l.b16 %v2037
    %v2090 = vunpack.c.h.b16 %v2037
    %v2091 = vunpack.c.l.b16 %v2038
    %v2092 = vunpack.c.h.b16 %v2038
    %v2093 = vunpack.c.l.b16 %v2039
    %v2094 = vunpack.c.h.b16 %v2039
    %v2095 = vunpack.c.l.b16 %v2040
    %v2096 = vunpack.c.h.b16 %v2040
    %v2097 = vunpack.c.l.b16 %v2041
    %v2098 = vunpack.c.h.b16 %v2041
    %v2099 = vunpack.c.l.b16 %v2042
    %v2100 = vunpack.c.h.b16 %v2042
    %v2101 = vunpack.c.l.b16 %v2043
    %v2102 = vunpack.c.h.b16 %v2043
    %v2103 = vunpack.c.l.b16 %v2044
    %v2104 = vunpack.c.h.b16 %v2044
    %v2105 = vpack.c.b16 %v2075, %v2073
    %v2106 = vpack.c.b16 %v2076, %v2074
    %v2107 = vpack.c.b16 %v2079, %v2077
    %v2108 = vpack.c.b16 %v2080, %v2078
    %v2109 = vpack.c.b16 %v2083, %v2081
    %v2110 = vpack.c.b16 %v2084, %v2082
    %v2111 = vpack.c.b16 %v2087, %v2085
    %v2112 = vpack.c.b16 %v2088, %v2086
    %v2113 = vpack.c.b16 %v2091, %v2089
    %v2114 = vpack.c.b16 %v2092, %v2090
    %v2115 = vpack.c.b16 %v2095, %v2093
    %v2116 = vpack.c.b16 %v2096, %v2094
    %v2117 = vpack.c.b16 %v2099, %v2097
    %v2118 = vpack.c.b16 %v2100, %v2098
    %v2119 = vpack.c.b16 %v2103, %v2101
    %v2120 = vpack.c.b16 %v2104, %v2102
    %2137 = vmatprep.subr.bf16.mxu0 %v2106
    %2138 = vmatpush1.bf16.msra.mxu0 %v2105
    %2139 = vmatprep.subr.bf16.mxu0 %v2108
    %2140 = vmatpush1.bf16.msra.mxu0 %v2107
    %2141 = vmatprep.subr.bf16.mxu0 %v2110
    %2142 = vmatpush1.bf16.msra.mxu0 %v2109
    %2143 = vmatprep.subr.bf16.mxu0 %v2112
    %2144 = vmatpush1.bf16.msra.mxu0 %v2111
    %2145 = vmatprep.subr.bf16.mxu0 %v2114
    %2146 = vmatpush1.bf16.msra.mxu0 %v2113
    %2147 = vmatprep.subr.bf16.mxu0 %v2116
    %2148 = vmatpush1.bf16.msra.mxu0 %v2115
    %2149 = vmatprep.subr.bf16.mxu0 %v2118
    %2150 = vmatpush1.bf16.msra.mxu0 %v2117
    %2151 = vmatprep.subr.bf16.mxu0 %v2120
    %2152 = vmatpush1.bf16.msra.mxu0 %v2119
    %2153 = vmatprep.subr.bf16.mxu0 0
    %2154 = vmatpush1.bf16.msra.mxu0 0
    %2155 = vmatprep.subr.bf16.mxu0 0
    %2156 = vmatpush1.bf16.msra.mxu0 0
    %2157 = vmatprep.subr.bf16.mxu0 0
    %2158 = vmatpush1.bf16.msra.mxu0 0
    %2159 = vmatprep.subr.bf16.mxu0 0
    %2160 = vmatpush1.bf16.msra.mxu0 0
    %2161 = vmatprep.subr.bf16.mxu0 0
    %2162 = vmatpush1.bf16.msra.mxu0 0
    %2163 = vmatprep.subr.bf16.mxu0 0
    %2164 = vmatpush1.bf16.msra.mxu0 0
    %2165 = vmatprep.subr.bf16.mxu0 0
    %2166 = vmatpush1.bf16.msra.mxu0 0
    %2167 = vmatprep.subr.bf16.mxu0 0
    %2168 = vmatpush1.bf16.msra.mxu0 0
    %2169 = vmatprep.mubr.bf16.mxu0 0
    %2170 = vmatmul.mubr.bf16.gmra.mrb[0].mxu0 %v2013
    %v2171 = vpop.f32.mrb[0].mxu0
    %v2172 = vadd.f32 %v2050, %v2171
    %v2173 = vpop.f32.mrb[0].mxu0
    %v2174 = vadd.f32 %v2054, %v2173
    %v2175 = vpop.f32.mrb[0].mxu0
    %v2176 = vadd.f32 %v2050, %v2175
    %v2177 = vpop.f32.mrb[0].mxu0
    %v2178 = vadd.f32 %v2054, %v2177
    %2179 = vmatprep.mubr.bf16.mxu0 0
    %2180 = vmatmul.mubr.bf16.gmra.mrb[0].mxu0 %v2014
    %v2181 = vpop.f32.mrb[0].mxu0
    %v2182 = vadd.f32 %v2050, %v2181
    %v2183 = vpop.f32.mrb[0].mxu0
    %v2184 = vadd.f32 %v2054, %v2183
    %v2185 = vpop.f32.mrb[0].mxu0
    %v2186 = vadd.f32 %v2050, %v2185
    %v2187 = vpop.f32.mrb[0].mxu0
    %v2188 = vadd.f32 %v2054, %v2187
    %2189 = vmatprep.mubr.bf16.mxu0 0
    %2190 = vmatmul.mubr.bf16.gmra.mrb[0].mxu0 %v2015
    %v2191 = vpop.f32.mrb[0].mxu0
    %v2192 = vadd.f32 %v2050, %v2191
    %v2193 = vpop.f32.mrb[0].mxu0
    %v2194 = vadd.f32 %v2054, %v2193
    %v2195 = vpop.f32.mrb[0].mxu0
    %v2196 = vadd.f32 %v2050, %v2195
    %v2197 = vpop.f32.mrb[0].mxu0
    %v2198 = vadd.f32 %v2054, %v2197
    %2199 = vmatprep.mubr.bf16.mxu0 0
    %2200 = vmatmul.mubr.bf16.gmra.mrb[0].mxu0 %v2016
    %v2201 = vpop.f32.mrb[0].mxu0
    %v2202 = vadd.f32 %v2050, %v2201
    %v2203 = vpop.f32.mrb[0].mxu0
    %v2204 = vadd.f32 %v2054, %v2203
    %v2205 = vpop.f32.mrb[0].mxu0
    %v2206 = vadd.f32 %v2050, %v2205
    %v2207 = vpop.f32.mrb[0].mxu0
    %v2208 = vadd.f32 %v2054, %v2207
    %2209 = vmatprep.mubr.bf16.mxu0 0
    %2210 = vmatmul.mubr.bf16.gmra.mrb[0].mxu0 %v2017
    %v2211 = vpop.f32.mrb[0].mxu0
    %v2212 = vadd.f32 %v2050, %v2211
    %v2213 = vpop.f32.mrb[0].mxu0
    %v2214 = vadd.f32 %v2054, %v2213
    %v2215 = vpop.f32.mrb[0].mxu0
    %v2216 = vadd.f32 %v2050, %v2215
    %v2217 = vpop.f32.mrb[0].mxu0
    %v2218 = vadd.f32 %v2054, %v2217
    %2219 = vmatprep.mubr.bf16.mxu0 0
    %2220 = vmatmul.mubr.bf16.gmra.mrb[0].mxu0 %v2018
    %v2221 = vpop.f32.mrb[0].mxu0
    %v2222 = vadd.f32 %v2050, %v2221
    %v2223 = vpop.f32.mrb[0].mxu0
    %v2224 = vadd.f32 %v2054, %v2223
    %v2225 = vpop.f32.mrb[0].mxu0
    %v2226 = vadd.f32 %v2050, %v2225
    %v2227 = vpop.f32.mrb[0].mxu0
    %v2228 = vadd.f32 %v2054, %v2227
    %2229 = vmatprep.mubr.bf16.mxu0 0
    %2230 = vmatmul.mubr.bf16.gmra.mrb[0].mxu0 %v2019
    %v2231 = vpop.f32.mrb[0].mxu0
    %v2232 = vadd.f32 %v2050, %v2231
    %v2233 = vpop.f32.mrb[0].mxu0
    %v2234 = vadd.f32 %v2054, %v2233
    %v2235 = vpop.f32.mrb[0].mxu0
    %v2236 = vadd.f32 %v2050, %v2235
    %v2237 = vpop.f32.mrb[0].mxu0
    %v2238 = vadd.f32 %v2054, %v2237
    %2239 = vmatprep.mubr.bf16.mxu0 0
    %2240 = vmatmul.mubr.bf16.gmra.mrb[0].mxu0 %v2020
    %v2241 = vpop.f32.mrb[0].mxu0
    %v2242 = vadd.f32 %v2050, %v2241
    %v2243 = vpop.f32.mrb[0].mxu0
    %v2244 = vadd.f32 %v2054, %v2243
    %v2245 = vpop.f32.mrb[0].mxu0
    %v2246 = vadd.f32 %v2050, %v2245
    %v2247 = vpop.f32.mrb[0].mxu0
    %v2248 = vadd.f32 %v2054, %v2247
    %2249 = vmatprep.mubr.bf16.mxu0 0
    %2250 = vmatmul.mubr.bf16.gmra.mrb[0].mxu0 %v2021
    %v2251 = vpop.f32.mrb[0].mxu0
    %v2252 = vadd.f32 %v2050, %v2251
    %v2253 = vpop.f32.mrb[0].mxu0
    %v2254 = vadd.f32 %v2054, %v2253
    %v2255 = vpop.f32.mrb[0].mxu0
    %v2256 = vadd.f32 %v2050, %v2255
    %v2257 = vpop.f32.mrb[0].mxu0
    %v2258 = vadd.f32 %v2054, %v2257
    %2259 = vmatprep.mubr.bf16.mxu0 0
    %2260 = vmatmul.mubr.bf16.gmra.mrb[0].mxu0 %v2022
    %v2261 = vpop.f32.mrb[0].mxu0
    %v2262 = vadd.f32 %v2050, %v2261
    %v2263 = vpop.f32.mrb[0].mxu0
    %v2264 = vadd.f32 %v2054, %v2263
    %v2265 = vpop.f32.mrb[0].mxu0
    %v2266 = vadd.f32 %v2050, %v2265
    %v2267 = vpop.f32.mrb[0].mxu0
    %v2268 = vadd.f32 %v2054, %v2267
    %2269 = vmatprep.mubr.bf16.mxu0 0
    %2270 = vmatmul.mubr.bf16.gmra.mrb[0].mxu0 %v2023
    %v2271 = vpop.f32.mrb[0].mxu0
    %v2272 = vadd.f32 %v2050, %v2271
    %v2273 = vpop.f32.mrb[0].mxu0
    %v2274 = vadd.f32 %v2054, %v2273
    %v2275 = vpop.f32.mrb[0].mxu0
    %v2276 = vadd.f32 %v2050, %v2275
    %v2277 = vpop.f32.mrb[0].mxu0
    %v2278 = vadd.f32 %v2054, %v2277
    %2279 = vmatprep.mubr.bf16.mxu0 0
    %2280 = vmatmul.mubr.bf16.gmra.mrb[0].mxu0 %v2024
    %v2281 = vpop.f32.mrb[0].mxu0
    %v2282 = vadd.f32 %v2050, %v2281
    %v2283 = vpop.f32.mrb[0].mxu0
    %v2284 = vadd.f32 %v2054, %v2283
    %v2285 = vpop.f32.mrb[0].mxu0
    %v2286 = vadd.f32 %v2050, %v2285
    %v2287 = vpop.f32.mrb[0].mxu0
    %v2288 = vadd.f32 %v2054, %v2287
    %2289 = vmatprep.mubr.bf16.mxu0 0
    %2290 = vmatmul.mubr.bf16.gmra.mrb[0].mxu0 %v2025
    %v2291 = vpop.f32.mrb[0].mxu0
    %v2292 = vadd.f32 %v2050, %v2291
    %v2293 = vpop.f32.mrb[0].mxu0
    %v2294 = vadd.f32 %v2054, %v2293
    %v2295 = vpop.f32.mrb[0].mxu0
    %v2296 = vadd.f32 %v2050, %v2295
    %v2297 = vpop.f32.mrb[0].mxu0
    %v2298 = vadd.f32 %v2054, %v2297
    %2299 = vmatprep.mubr.bf16.mxu0 0
    %2300 = vmatmul.mubr.bf16.gmra.mrb[0].mxu0 %v2026
    %v2301 = vpop.f32.mrb[0].mxu0
    %v2302 = vadd.f32 %v2050, %v2301
    %v2303 = vpop.f32.mrb[0].mxu0
    %v2304 = vadd.f32 %v2054, %v2303
    %v2305 = vpop.f32.mrb[0].mxu0
    %v2306 = vadd.f32 %v2050, %v2305
    %v2307 = vpop.f32.mrb[0].mxu0
    %v2308 = vadd.f32 %v2054, %v2307
    %2309 = vmatprep.mubr.bf16.mxu0 0
    %2310 = vmatmul.mubr.bf16.gmra.mrb[0].mxu0 %v2027
    %v2311 = vpop.f32.mrb[0].mxu0
    %v2312 = vadd.f32 %v2050, %v2311
    %v2313 = vpop.f32.mrb[0].mxu0
    %v2314 = vadd.f32 %v2054, %v2313
    %v2315 = vpop.f32.mrb[0].mxu0
    %v2316 = vadd.f32 %v2050, %v2315
    %v2317 = vpop.f32.mrb[0].mxu0
    %v2318 = vadd.f32 %v2054, %v2317
    %2319 = vmatprep.mubr.bf16.mxu0 0
    %2320 = vmatmul.mubr.bf16.gmra.mrb[0].mxu0 %v2028
    %v2321 = vpop.f32.mrb[0].mxu0
    %v2322 = vadd.f32 %v2050, %v2321
    %v2323 = vpop.f32.mrb[0].mxu0
    %v2324 = vadd.f32 %v2054, %v2323
    %v2325 = vpop.f32.mrb[0].mxu0
    %v2326 = vadd.f32 %v2050, %v2325
    %v2327 = vpop.f32.mrb[0].mxu0
    %v2328 = vadd.f32 %v2054, %v2327
    %2329 = vdwg.mxu0
    %v2330 = vmax.f32 %v2172, 0.0
    %v2331 = vmax.f32 %v2174, 0.0
    %v2332 = vmax.f32 %v2176, 0.0
    %v2333 = vmax.f32 %v2178, 0.0
    %v2334 = vmax.f32 %v2182, 0.0
    %v2335 = vmax.f32 %v2184, 0.0
    %v2336 = vmax.f32 %v2186, 0.0
    %v2337 = vmax.f32 %v2188, 0.0
    %v2338 = vmax.f32 %v2192, 0.0
    %v2339 = vmax.f32 %v2194, 0.0
    %v2340 = vmax.f32 %v2196, 0.0
    %v2341 = vmax.f32 %v2198, 0.0
    %v2342 = vmax.f32 %v2202, 0.0
    %v2343 = vmax.f32 %v2204, 0.0
    %v2344 = vmax.f32 %v2206, 0.0
    %v2345 = vmax.f32 %v2208, 0.0
    %v2346 = vmax.f32 %v2212, 0.0
    %v2347 = vmax.f32 %v2214, 0.0
    %v2348 = vmax.f32 %v2216, 0.0
    %v2349 = vmax.f32 %v2218, 0.0
    %v2350 = vmax.f32 %v2222, 0.0
    %v2351 = vmax.f32 %v2224, 0.0
    %v2352 = vmax.f32 %v2226, 0.0
    %v2353 = vmax.f32 %v2228, 0.0
    %v2354 = vmax.f32 %v2232, 0.0
    %v2355 = vmax.f32 %v2234, 0.0
    %v2356 = vmax.f32 %v2236, 0.0
    %v2357 = vmax.f32 %v2238, 0.0
    %v2358 = vmax.f32 %v2242, 0.0
    %v2359 = vmax.f32 %v2244, 0.0
    %v2360 = vmax.f32 %v2246, 0.0
    %v2361 = vmax.f32 %v2248, 0.0
    %v2362 = vmax.f32 %v2252, 0.0
    %v2363 = vmax.f32 %v2254, 0.0
    %v2364 = vmax.f32 %v2256, 0.0
    %v2365 = vmax.f32 %v2258, 0.0
    %v2366 = vmax.f32 %v2262, 0.0
    %v2367 = vmax.f32 %v2264, 0.0
    %v2368 = vmax.f32 %v2266, 0.0
    %v2369 = vmax.f32 %v2268, 0.0
    %v2370 = vmax.f32 %v2272, 0.0
    %v2371 = vmax.f32 %v2274, 0.0
    %v2372 = vmax.f32 %v2276, 0.0
    %v2373 = vmax.f32 %v2278, 0.0
    %v2374 = vmax.f32 %v2282, 0.0
    %v2375 = vmax.f32 %v2284, 0.0
    %v2376 = vmax.f32 %v2286, 0.0
    %v2377 = vmax.f32 %v2288, 0.0
    %v2378 = vmax.f32 %v2292, 0.0
    %v2379 = vmax.f32 %v2294, 0.0
    %v2380 = vmax.f32 %v2296, 0.0
    %v2381 = vmax.f32 %v2298, 0.0
    %v2382 = vmax.f32 %v2302, 0.0
    %v2383 = vmax.f32 %v2304, 0.0
    %v2384 = vmax.f32 %v2306, 0.0
    %v2385 = vmax.f32 %v2308, 0.0
    %v2386 = vmax.f32 %v2312, 0.0
    %v2387 = vmax.f32 %v2314, 0.0
    %v2388 = vmax.f32 %v2316, 0.0
    %v2389 = vmax.f32 %v2318, 0.0
    %v2390 = vmax.f32 %v2322, 0.0
    %v2391 = vmax.f32 %v2324, 0.0
    %v2392 = vmax.f32 %v2326, 0.0
    %v2393 = vmax.f32 %v2328, 0.0
    %v2394 = vpack.c.bf16 %v2332, %v2330
    %v2395 = vpack.c.bf16 %v2333, %v2331
    %v2396 = vpack.c.bf16 %v2336, %v2334
    %v2397 = vpack.c.bf16 %v2337, %v2335
    %v2398 = vpack.c.bf16 %v2340, %v2338
    %v2399 = vpack.c.bf16 %v2341, %v2339
    %v2400 = vpack.c.bf16 %v2344, %v2342
    %v2401 = vpack.c.bf16 %v2345, %v2343
    %v2402 = vpack.c.bf16 %v2348, %v2346
    %v2403 = vpack.c.bf16 %v2349, %v2347
    %v2404 = vpack.c.bf16 %v2352, %v2350
    %v2405 = vpack.c.bf16 %v2353, %v2351
    %v2406 = vpack.c.bf16 %v2356, %v2354
    %v2407 = vpack.c.bf16 %v2357, %v2355
    %v2408 = vpack.c.bf16 %v2360, %v2358
    %v2409 = vpack.c.bf16 %v2361, %v2359
    %v2410 = vpack.c.bf16 %v2364, %v2362
    %v2411 = vpack.c.bf16 %v2365, %v2363
    %v2412 = vpack.c.bf16 %v2368, %v2366
    %v2413 = vpack.c.bf16 %v2369, %v2367
    %v2414 = vpack.c.bf16 %v2372, %v2370
    %v2415 = vpack.c.bf16 %v2373, %v2371
    %v2416 = vpack.c.bf16 %v2376, %v2374
    %v2417 = vpack.c.bf16 %v2377, %v2375
    %v2418 = vpack.c.bf16 %v2380, %v2378
    %v2419 = vpack.c.bf16 %v2381, %v2379
    %v2420 = vpack.c.bf16 %v2384, %v2382
    %v2421 = vpack.c.bf16 %v2385, %v2383
    %v2422 = vpack.c.bf16 %v2388, %v2386
    %v2423 = vpack.c.bf16 %v2389, %v2387
    %v2424 = vpack.c.bf16 %v2392, %v2390
    %v2425 = vpack.c.bf16 %v2393, %v2391
    %v2458 = vunpack.c.l.b16 %v2394
    %v2459 = vunpack.c.l.b16 %v2395
    %v2460 = vunpack.c.h.b16 %v2394
    %v2461 = vunpack.c.h.b16 %v2395
    %v2462 = vunpack.c.l.b16 %v2396
    %v2463 = vunpack.c.l.b16 %v2397
    %v2464 = vunpack.c.h.b16 %v2396
    %v2465 = vunpack.c.h.b16 %v2397
    %v2466 = vunpack.c.l.b16 %v2398
    %v2467 = vunpack.c.l.b16 %v2399
    %v2468 = vunpack.c.h.b16 %v2398
    %v2469 = vunpack.c.h.b16 %v2399
    %v2470 = vunpack.c.l.b16 %v2400
    %v2471 = vunpack.c.l.b16 %v2401
    %v2472 = vunpack.c.h.b16 %v2400
    %v2473 = vunpack.c.h.b16 %v2401
    %v2474 = vunpack.c.l.b16 %v2402
    %v2475 = vunpack.c.l.b16 %v2403
    %v2476 = vunpack.c.h.b16 %v2402
    %v2477 = vunpack.c.h.b16 %v2403
    %v2478 = vunpack.c.l.b16 %v2404
    %v2479 = vunpack.c.l.b16 %v2405
    %v2480 = vunpack.c.h.b16 %v2404
    %v2481 = vunpack.c.h.b16 %v2405
    %v2482 = vunpack.c.l.b16 %v2406
    %v2483 = vunpack.c.l.b16 %v2407
    %v2484 = vunpack.c.h.b16 %v2406
    %v2485 = vunpack.c.h.b16 %v2407
    %v2486 = vunpack.c.l.b16 %v2408
    %v2487 = vunpack.c.l.b16 %v2409
    %v2488 = vunpack.c.h.b16 %v2408
    %v2489 = vunpack.c.h.b16 %v2409
    %v2490 = vunpack.c.l.b16 %v2410
    %v2491 = vunpack.c.l.b16 %v2411
    %v2492 = vunpack.c.h.b16 %v2410
    %v2493 = vunpack.c.h.b16 %v2411
    %v2494 = vunpack.c.l.b16 %v2412
    %v2495 = vunpack.c.l.b16 %v2413
    %v2496 = vunpack.c.h.b16 %v2412
    %v2497 = vunpack.c.h.b16 %v2413
    %v2498 = vunpack.c.l.b16 %v2414
    %v2499 = vunpack.c.l.b16 %v2415
    %v2500 = vunpack.c.h.b16 %v2414
    %v2501 = vunpack.c.h.b16 %v2415
    %v2502 = vunpack.c.l.b16 %v2416
    %v2503 = vunpack.c.l.b16 %v2417
    %v2504 = vunpack.c.h.b16 %v2416
    %v2505 = vunpack.c.h.b16 %v2417
    %v2506 = vunpack.c.l.b16 %v2418
    %v2507 = vunpack.c.l.b16 %v2419
    %v2508 = vunpack.c.h.b16 %v2418
    %v2509 = vunpack.c.h.b16 %v2419
    %v2510 = vunpack.c.l.b16 %v2420
    %v2511 = vunpack.c.l.b16 %v2421
    %v2512 = vunpack.c.h.b16 %v2420
    %v2513 = vunpack.c.h.b16 %v2421
    %v2514 = vunpack.c.l.b16 %v2422
    %v2515 = vunpack.c.l.b16 %v2423
    %v2516 = vunpack.c.h.b16 %v2422
    %v2517 = vunpack.c.h.b16 %v2423
    %v2518 = vunpack.c.l.b16 %v2424
    %v2519 = vunpack.c.l.b16 %v2425
    %v2520 = vunpack.c.h.b16 %v2424
    %v2521 = vunpack.c.h.b16 %v2425
    %v2522 = vpack.c.b16 %v2459, %v2458
    %v2523 = vpack.c.b16 %v2461, %v2460
    %v2524 = vpack.c.b16 %v2463, %v2462
    %v2525 = vpack.c.b16 %v2465, %v2464
    %v2526 = vpack.c.b16 %v2467, %v2466
    %v2527 = vpack.c.b16 %v2469, %v2468
    %v2528 = vpack.c.b16 %v2471, %v2470
    %v2529 = vpack.c.b16 %v2473, %v2472
    %v2530 = vpack.c.b16 %v2475, %v2474
    %v2531 = vpack.c.b16 %v2477, %v2476
    %v2532 = vpack.c.b16 %v2479, %v2478
    %v2533 = vpack.c.b16 %v2481, %v2480
    %v2534 = vpack.c.b16 %v2483, %v2482
    %v2535 = vpack.c.b16 %v2485, %v2484
    %v2536 = vpack.c.b16 %v2487, %v2486
    %v2537 = vpack.c.b16 %v2489, %v2488
    %v2538 = vpack.c.b16 %v2491, %v2490
    %v2539 = vpack.c.b16 %v2493, %v2492
    %v2540 = vpack.c.b16 %v2495, %v2494
    %v2541 = vpack.c.b16 %v2497, %v2496
    %v2542 = vpack.c.b16 %v2499, %v2498
    %v2543 = vpack.c.b16 %v2501, %v2500
    %v2544 = vpack.c.b16 %v2503, %v2502
    %v2545 = vpack.c.b16 %v2505, %v2504
    %v2546 = vpack.c.b16 %v2507, %v2506
    %v2547 = vpack.c.b16 %v2509, %v2508
    %v2548 = vpack.c.b16 %v2511, %v2510
    %v2549 = vpack.c.b16 %v2513, %v2512
    %v2550 = vpack.c.b16 %v2515, %v2514
    %v2551 = vpack.c.b16 %v2517, %v2516
    %v2552 = vpack.c.b16 %v2519, %v2518
    %v2553 = vpack.c.b16 %v2521, %v2520
    %2586 = vst [vmem:[#allocation8] sm:$0xff] %v2522
    %2587 = vst [vmem:[#allocation8 + $0x8] sm:$0xff] %v2523
    %2588 = vst [vmem:[#allocation8 + $0x10] sm:$0xff] %v2524
    %2589 = vst [vmem:[#allocation8 + $0x18] sm:$0xff] %v2525
    %2590 = vst [vmem:[#allocation8 + $0x20] sm:$0xff] %v2526
    %2591 = vst [vmem:[#allocation8 + $0x28] sm:$0xff] %v2527
    %2592 = vst [vmem:[#allocation8 + $0x30] sm:$0xff] %v2528
    %2593 = vst [vmem:[#allocation8 + $0x38] sm:$0xff] %v2529
    %2594 = vst [vmem:[#allocation8 + $0x40] sm:$0xff] %v2530
    %2595 = vst [vmem:[#allocation8 + $0x48] sm:$0xff] %v2531
    %2596 = vst [vmem:[#allocation8 + $0x50] sm:$0xff] %v2532
    %2597 = vst [vmem:[#allocation8 + $0x58] sm:$0xff] %v2533
    %2598 = vst [vmem:[#allocation8 + $0x60] sm:$0xff] %v2534
    %2599 = vst [vmem:[#allocation8 + $0x68] sm:$0xff] %v2535
    %2600 = vst [vmem:[#allocation8 + $0x70] sm:$0xff] %v2536
    %2601 = vst [vmem:[#allocation8 + $0x78] sm:$0xff] %v2537
    %2602 = vst [vmem:[#allocation8 + $0x80] sm:$0xff] %v2538
    %2603 = vst [vmem:[#allocation8 + $0x88] sm:$0xff] %v2539
    %2604 = vst [vmem:[#allocation8 + $0x90] sm:$0xff] %v2540
    %2605 = vst [vmem:[#allocation8 + $0x98] sm:$0xff] %v2541
    %2606 = vst [vmem:[#allocation8 + $0xa0] sm:$0xff] %v2542
    %2607 = vst [vmem:[#allocation8 + $0xa8] sm:$0xff] %v2543
    %2608 = vst [vmem:[#allocation8 + $0xb0] sm:$0xff] %v2544
    %2609 = vst [vmem:[#allocation8 + $0xb8] sm:$0xff] %v2545
    %2610 = vst [vmem:[#allocation8 + $0xc0] sm:$0xff] %v2546
    %2611 = vst [vmem:[#allocation8 + $0xc8] sm:$0xff] %v2547
    %2612 = vst [vmem:[#allocation8 + $0xd0] sm:$0xff] %v2548
    %2613 = vst [vmem:[#allocation8 + $0xd8] sm:$0xff] %v2549
    %2614 = vst [vmem:[#allocation8 + $0xe0] sm:$0xff] %v2550
    %2615 = vst [vmem:[#allocation8 + $0xe8] sm:$0xff] %v2551
    %2616 = vst [vmem:[#allocation8 + $0xf0] sm:$0xff] %v2552
    %2617 = vst [vmem:[#allocation8 + $0xf8] sm:$0xff] %v2553
    %vm2618 = vcmask 261120
    %2619 = vst.msk [vmem:[%s15] sm:$0xff] %vm2618, %v1014
    %2620 = vst.msk [vmem:[%s15 + $0x8] sm:$0xff] %vm2618, %v1017
    %2621 = vst.msk [vmem:[%s15 + $0x10] sm:$0xff] %vm2618, %v1022
    %2622 = vst.msk [vmem:[%s15 + $0x18] sm:$0xff] %vm2618, %v1025
    %2623 = vst.msk [vmem:[%s15 + $0x20] sm:$0xff] %vm2618, %v1030
    %2624 = vst.msk [vmem:[%s15 + $0x28] sm:$0xff] %vm2618, %v1033
    %2625 = vst.msk [vmem:[%s15 + $0x30] sm:$0xff] %vm2618, %v1038
    %2626 = vst.msk [vmem:[%s15 + $0x38] sm:$0xff] %vm2618, %v1041
    %2627 = vst.msk [vmem:[%s15 + $0x40] sm:$0xff] %vm2618, %v1046
    %2628 = vst.msk [vmem:[%s15 + $0x48] sm:$0xff] %vm2618, %v1049
    %2629 = vst.msk [vmem:[%s15 + $0x50] sm:$0xff] %vm2618, %v1054
    %2630 = vst.msk [vmem:[%s15 + $0x58] sm:$0xff] %vm2618, %v1057
    %2631 = vst.msk [vmem:[%s15 + $0x60] sm:$0xff] %vm2618, %v1062
    %2632 = vst.msk [vmem:[%s15 + $0x68] sm:$0xff] %vm2618, %v1065
    %2633 = vst.msk [vmem:[%s15 + $0x70] sm:$0xff] %vm2618, %v1070
    %2634 = vst.msk [vmem:[%s15 + $0x78] sm:$0xff] %vm2618, %v1073
    %2635 = vst.msk [vmem:[%s15 + $0x80] sm:$0xff] %vm2618, %v1078
    %2636 = vst.msk [vmem:[%s15 + $0x88] sm:$0xff] %vm2618, %v1081
    %2637 = vst.msk [vmem:[%s15 + $0x90] sm:$0xff] %vm2618, %v1086
    %2638 = vst.msk [vmem:[%s15 + $0x98] sm:$0xff] %vm2618, %v1089
    %2639 = vst.msk [vmem:[%s15 + $0xa0] sm:$0xff] %vm2618, %v1094
    %2640 = vst.msk [vmem:[%s15 + $0xa8] sm:$0xff] %vm2618, %v1097
    %2641 = vst.msk [vmem:[%s15 + $0xb0] sm:$0xff] %vm2618, %v1102
    %2642 = vst.msk [vmem:[%s15 + $0xb8] sm:$0xff] %vm2618, %v1105
    %2643 = vst.msk [vmem:[%s15 + $0xc0] sm:$0xff] %vm2618, %v1110
    %2644 = vst.msk [vmem:[%s15 + $0xc8] sm:$0xff] %vm2618, %v1113
    %2645 = vst.msk [vmem:[%s15 + $0xd0] sm:$0xff] %vm2618, %v1118
    %2646 = vst.msk [vmem:[%s15 + $0xd8] sm:$0xff] %vm2618, %v1121
    %2647 = vst.msk [vmem:[%s15 + $0xe0] sm:$0xff] %vm2618, %v1126
    %2648 = vst.msk [vmem:[%s15 + $0xe8] sm:$0xff] %vm2618, %v1129
    %2649 = vst.msk [vmem:[%s15 + $0xf0] sm:$0xff] %vm2618, %v1134
    %2650 = vst.msk [vmem:[%s15 + $0xf8] sm:$0xff] %vm2618, %v1137
    // Predicated region
    $region70: #{tpu_custom_call.1} parent=1 // pred_check
      _
    $region71: #{tpu_custom_call.1} parent=1 // pred_check_branch
      %2652 = sbr.rel (0) target = $region73
    $region72: #{tpu_custom_call.1} parent=1 // pred_region
      %s2654 = ssub.s32 4096, 4096
      %2655 = vsyncadd [#allocation4], %s2654
      %s2656 = sshll.u32 [#allocation8], 4
      %s2657 = int_to_ptr.vmem [resolvable:$true] %s2656
      %2662 = dma.vmem_to_hbm [thread:$0]  %s2657, 4096, %s14, [#allocation4], 128, 128, 8
    $region73: #{tpu_custom_call.1} parent=1 // pred_fallthru
      _
    // Predicated region
    $region74: #{tpu_custom_call.1} parent=1 // pred_check
      _
    $region75: #{tpu_custom_call.1} parent=1 // pred_check_branch
      %2664 = sbr.rel (0) target = $region77
    $region76: #{tpu_custom_call.1} parent=1 // pred_region
      _
    $region77: #{tpu_custom_call.1} parent=1 // pred_fallthru
      _
    // Predicated region
    $region78: #{tpu_custom_call.1} parent=1 // pred_check
      _
    $region79: #{tpu_custom_call.1} parent=1 // pred_check_branch
      %2666 = sbr.rel (0) target = $region81
    $region80: #{tpu_custom_call.1} parent=1 // pred_region
      %2667 = dma.done [#allocation4], 4096
    $region81: #{tpu_custom_call.1} parent=1 // pred_fallthru
      _
    // Predicated region
    $region82: #{tpu_custom_call.1} parent=1 // pred_check
      _
    $region83: #{tpu_custom_call.1} parent=1 // pred_check_branch
      %2669 = sbr.rel (0) target = $region85
    $region84: #{tpu_custom_call.1} parent=1 // pred_region
      _
    $region85: #{tpu_custom_call.1} parent=1 // pred_fallthru
      _
    %2670 = vsyncpa [#allocation3], 1
    %2671 = vsyncpa [#allocation6], 1
    %2672 = vsyncpa [#allocation4], 1

</llo_original>
